<compile_context>
chip_gen: v7x
topology: tpu7x:2x2x1
jax: 0.10.0
libtpu: 0.0.40
codegen_flags: <defaults>
</compile_context>

<pallas_src>
import functools

import jax
import jax.numpy as jnp
from jax import lax
from jax.experimental import pallas as pl
from jax.experimental.pallas import tpu as pltpu


def _vmem_limit(*nbytes):
    """Explicit VMEM budget sized to the tiles actually used (+ margin)."""
    return int(max(sum(int(b) for b in nbytes) + (8 << 20), 16 << 20))


# ----------------------------------------------------------------------------
# Kernel 1:  h = relu(A_tile @ (X @ W1) + b1)        (row-tiled, "parallel")
# ----------------------------------------------------------------------------
def gcn_layer1_kernel(a_ref, x_ref, w1_ref, b1_ref, h_ref):
    xw1 = jnp.dot(x_ref[...], w1_ref[...], preferred_element_type=jnp.float32)
    h = jnp.dot(a_ref[...], xw1.astype(jnp.bfloat16),
                preferred_element_type=jnp.float32)
    h_ref[...] = jnp.maximum(h + b1_ref[...], 0.0).astype(jnp.bfloat16)


def gcn_layer1(a_hat, x, w1, b1, *, tm):
    n = a_hat.shape[0]
    f = x.shape[1]
    hid = w1.shape[1]
    assert n % tm == 0
    vmem = _vmem_limit(2 * tm * n * 2,      # double-buffered A tile (bf16)
                       n * f * 2,           # X (bf16, resident)
                       f * hid * 2,         # W1 (bf16)
                       8 * 128 * 4,         # b1 (padded)
                       2 * tm * hid * 2)    # double-buffered h tile out
    return pl.pallas_call(
        gcn_layer1_kernel,
        grid=(n // tm,),
        in_specs=[
            pl.BlockSpec((tm, n), lambda i: (i, 0)),
            pl.BlockSpec((n, f), lambda i: (0, 0)),
            pl.BlockSpec((f, hid), lambda i: (0, 0)),
            pl.BlockSpec((1, hid), lambda i: (0, 0)),
        ],
        out_specs=pl.BlockSpec((tm, hid), lambda i: (i, 0)),
        out_shape=jax.ShapeDtypeStruct((n, hid), jnp.bfloat16),
        compiler_params=pltpu.CompilerParams(
            dimension_semantics=("parallel",),
            vmem_limit_bytes=vmem,
        ),
    )(a_hat, x, w1, b1)


# ----------------------------------------------------------------------------
# Kernel 2:  z = (A_tile @ h) @ W2 + b2  (kept in VMEM scratch), then fused
#            per-edge dot-product epilogue on the last grid step -> (1, E).
# ----------------------------------------------------------------------------
def gcn_layer2_scores_kernel(a_ref, h_ref, w2_ref, b2_ref, idx_ref,
                             s_ref, z_scratch):
    t = pl.program_id(0)
    tm = a_ref.shape[0]
    n, _ = z_scratch.shape
    e = idx_ref.shape[1]

    @pl.when(t == 0)
    def _():
        s_ref[...] = jnp.zeros_like(s_ref)

    # (A @ h) @ W2 ordering: the big N^2 matmul produces H=32 lanes, the tiny
    # [H, C] matmul stays off the A-streaming path.  z stays on-chip.
    ah = jnp.dot(a_ref[...], h_ref[...], preferred_element_type=jnp.float32)
    z_tile = jnp.dot(ah, w2_ref[...],
                     preferred_element_type=jnp.float32) + b2_ref[...]
    row0 = pl.multiple_of(t * tm, tm)
    z_scratch[pl.ds(row0, tm), :] = z_tile

    # Fused edge-score epilogue (torch.einsum('ef,ef->e', x_i, x_j)):
    # gather-as-matmul with one-hot selectors, lane-dense (1, E) output.
    @pl.when(t == pl.num_programs(0) - 1)
    def _():
        z = z_scratch[...]                                      # (N, C) f32
        idx = idx_ref[...]                                      # (2, E) int32
        node_iota = lax.broadcasted_iota(jnp.int32, (n, e), 0)
        oh_j = (node_iota == idx[0:1, :]).astype(jnp.float32)   # rows[src]
        oh_i = (node_iota == idx[1:2, :]).astype(jnp.float32)   # rows[dst]
        xj_t = lax.dot_general(z, oh_j, (((0,), (0,)), ((), ())),
                               preferred_element_type=jnp.float32)  # (C, E)
        xi_t = lax.dot_general(z, oh_i, (((0,), (0,)), ((), ())),
                               preferred_element_type=jnp.float32)  # (C, E)
        s_ref[...] = jnp.sum(xi_t * xj_t, axis=0, keepdims=True)    # (1, E)


def gcn_layer2_scores(a_hat, h, w2, b2, edge_idx, *, tm):
    n = a_hat.shape[0]
    hid = h.shape[1]
    c = w2.shape[1]
    e = edge_idx.shape[1]
    assert n % tm == 0
    vmem = _vmem_limit(2 * tm * n * 2,      # double-buffered A tile (bf16)
                       n * hid * 2,         # h (bf16, resident)
                       hid * c * 4,         # W2
                       8 * 128 * 4,         # b2 (padded)
                       8 * max(e, 128) * 4, # edge index (padded)
                       n * c * 4,           # z scratch
                       2 * max(e, 128) * 4) # scores out
    return pl.pallas_call(
        gcn_layer2_scores_kernel,
        grid=(n // tm,),
        in_specs=[
            pl.BlockSpec((tm, n), lambda i: (i, 0)),
            pl.BlockSpec((n, hid), lambda i: (0, 0)),
            pl.BlockSpec((hid, c), lambda i: (0, 0)),
            pl.BlockSpec((1, c), lambda i: (0, 0)),
            pl.BlockSpec((2, e), lambda i: (0, 0)),
        ],
        out_specs=pl.BlockSpec((1, e), lambda i: (0, 0)),
        out_shape=jax.ShapeDtypeStruct((1, e), jnp.float32),
        scratch_shapes=[pltpu.VMEM((n, c), jnp.float32)],
        compiler_params=pltpu.CompilerParams(
            # z scratch + edge epilogue need every row tile on one core.
            dimension_semantics=("arbitrary",),
            vmem_limit_bytes=vmem,
        ),
    )(a_hat, h, w2, b2, edge_idx)


# ----------------------------------------------------------------------------
# Glue (forward mirrors Net_inner.forward)
# ----------------------------------------------------------------------------
def build_normalized_adjacency(edge_index, num_nodes):
    """Dense GCN-normalized adjacency with self loops (PyG gcn_norm semantics:
    scatter-ADD edge weights, then add self loops).  Hoisted: computed once
    per graph, outside the per-forward hot path."""
    src, dst = edge_index[0], edge_index[1]
    a = jnp.zeros((num_nodes, num_nodes), jnp.float32)
    a = a.at[dst, src].add(1.0)                     # edge j -> i at A[i, j]
    a = a + jnp.eye(num_nodes, dtype=jnp.float32)   # self loops
    deg = jnp.sum(a, axis=1)
    dinv = jnp.where(deg > 0, 1.0 / jnp.sqrt(deg), 0.0)
    return dinv[:, None] * a * dinv[None, :]


def net_inner_forward(x, a_hat_bf16, pos_edge_index, neg_edge_index, params,
                      *, tm=128):
    """Mirror of Net_inner.forward.  a_hat is precomputed per graph (bf16)."""
    total_edge_index = jnp.concatenate([pos_edge_index, neg_edge_index], axis=-1)
    h = gcn_layer1(a_hat_bf16, x.astype(jnp.bfloat16),
                   params["w1"].astype(jnp.bfloat16), params["b1"], tm=tm)
    scores = gcn_layer2_scores(a_hat_bf16, h, params["w2"], params["b2"],
                               total_edge_index.astype(jnp.int32), tm=tm)
    return scores[0], jnp.zeros(total_edge_index.shape, jnp.float32)


def reference_scores(x, a_hat_bf16, total_edge_index, params):
    """Plain-JAX reference with the same bf16 rounding points as the kernels."""
    a = a_hat_bf16.astype(jnp.float32)
    xb = x.astype(jnp.bfloat16).astype(jnp.float32)
    w1 = params["w1"].astype(jnp.bfloat16).astype(jnp.float32)
    xw1 = (xb @ w1).astype(jnp.bfloat16).astype(jnp.float32)
    h = jnp.maximum(a @ xw1 + params["b1"], 0.0)
    h = h.astype(jnp.bfloat16).astype(jnp.float32)
    z = (a @ h) @ params["w2"] + params["b2"]
    x_j = z[total_edge_index[0]]
    x_i = z[total_edge_index[1]]
    return jnp.sum(x_i * x_j, axis=-1)


# ----------------------------------------------------------------------------
# Main
# ----------------------------------------------------------------------------
if __name__ == "__main__":
    N_NODES = 256        # number of graph nodes (2 row tiles of 128)
    NUM_FEATURES = 16    # dataset.num_features
    HIDDEN = 32          # args.hidden
    NUM_CLASSES = 8      # dataset.num_classes
    E_GRAPH = 512        # message-passing edges
    E_POS, E_NEG = 16, 16
    TM = 128             # row-tile size for A_hat

    key = jax.random.PRNGKey(0)
    kx, ke1, ke2, kp, kn, kw1, kw2, kws = jax.random.split(key, 8)

    x = jax.random.normal(kx, (N_NODES, NUM_FEATURES), jnp.float32)

    # graph edges (no self loops by construction)
    src = jax.random.randint(ke1, (E_GRAPH,), 0, N_NODES, jnp.int32)
    off = jax.random.randint(ke2, (E_GRAPH,), 1, N_NODES, jnp.int32)
    dst = (src + off) % N_NODES
    edge_index = jnp.stack([src, dst], axis=0)

    pos_edge_index = jax.random.randint(kp, (2, E_POS), 0, N_NODES, jnp.int32)
    neg_edge_index = jax.random.randint(kn, (2, E_NEG), 0, N_NODES, jnp.int32)

    def glorot(k, shape):
        lim = jnp.sqrt(6.0 / (shape[0] + shape[1]))
        return jax.random.uniform(k, shape, jnp.float32, -lim, lim)

    params = {
        "w1": glorot(kw1, (NUM_FEATURES, HIDDEN)),
        "b1": jnp.zeros((1, HIDDEN), jnp.float32),
        "w2": glorot(kw2, (HIDDEN, NUM_CLASSES)),
        "b2": jnp.zeros((1, NUM_CLASSES), jnp.float32),
        # self.score = Linear(num_classes, 1): initialized but unused in forward.
        "score_w": glorot(kws, (NUM_CLASSES, 1)),
        "score_b": jnp.zeros((1,), jnp.float32),
    }

    # Hoisted: normalized adjacency built once per graph, cast to bf16 once.
    a_hat = build_normalized_adjacency(edge_index, N_NODES)
    a_hat_bf16 = a_hat.astype(jnp.bfloat16)

    forward = jax.jit(functools.partial(net_inner_forward, tm=TM))
    scores, zeros_out = forward(x, a_hat_bf16, pos_edge_index, neg_edge_index,
                                params)
    jax.block_until_ready((scores, zeros_out))

    assert scores.shape == (E_POS + E_NEG,)
    assert zeros_out.shape == (2, E_POS + E_NEG)

    total_edge_index = jnp.concatenate([pos_edge_index, neg_edge_index], axis=-1)
    ref = reference_scores(x, a_hat_bf16, total_edge_index, params)
    assert bool(jnp.all(jnp.isfinite(scores)))
    assert bool(jnp.allclose(scores, ref, rtol=2e-2, atol=2e-2)), (
        "mismatch vs reference")

    print("KERNEL_OK")
</pallas_src>

<mosaic_0001>
module attributes {stable_mosaic.version = 11 : i64} {
  func.func @gcn_layer1_kernel(%arg0: i32, %arg1: memref<128x256xbf16, #tpu.memory_space<vmem>>, %arg2: memref<256x16xbf16, #tpu.memory_space<vmem>>, %arg3: memref<16x32xbf16, #tpu.memory_space<vmem>>, %arg4: memref<1x32xf32, #tpu.memory_space<vmem>>, %arg5: memref<128x32xbf16, #tpu.memory_space<vmem>>) attributes {dimension_semantics = [#tpu.dimension_semantics<parallel>], iteration_bounds = array<i64: 2>, scalar_prefetch = 0 : i64, scratch_operands = 0 : i64, tpu.core_type = #tpu.core_type<tc>, window_params = [{transform_indices = @transform_0, window_bounds = array<i64: 128, 256>}, {pipeline_mode = #tpu.pipeline_mode<synchronous>, transform_indices = @transform_1, window_bounds = array<i64: 256, 16>}, {pipeline_mode = #tpu.pipeline_mode<synchronous>, transform_indices = @transform_2, window_bounds = array<i64: 16, 32>}, {pipeline_mode = #tpu.pipeline_mode<synchronous>, transform_indices = @transform_3, window_bounds = array<i64: 1, 32>}, {transform_indices = @transform_4, window_bounds = array<i64: 128, 32>}]} {
    %c0 = arith.constant 0 : index
    %c0_0 = arith.constant 0 : index
    %0 = vector.load %arg2[%c0, %c0_0] : memref<256x16xbf16, #tpu.memory_space<vmem>>, vector<256x16xbf16>
    %c0_1 = arith.constant 0 : index
    %c0_2 = arith.constant 0 : index
    %1 = vector.load %arg3[%c0_1, %c0_2] : memref<16x32xbf16, #tpu.memory_space<vmem>>, vector<16x32xbf16>
    %cst = arith.constant dense<0.000000e+00> : vector<256x32xf32>
    %2 = tpu.matmul %0, %1, %cst {dimension_numbers = #tpu.dot_dimension_numbers<[1], [0], [0], [1], [0, 0, 1, 1], [], []>} : vector<256x16xbf16>, vector<16x32xbf16>, vector<256x32xf32> -> vector<256x32xf32>
    %c0_3 = arith.constant 0 : index
    %c0_4 = arith.constant 0 : index
    %3 = vector.load %arg1[%c0_3, %c0_4] : memref<128x256xbf16, #tpu.memory_space<vmem>>, vector<128x256xbf16>
    %4 = arith.truncf %2 : vector<256x32xf32> to vector<256x32xbf16>
    %cst_5 = arith.constant dense<0.000000e+00> : vector<128x32xf32>
    %5 = tpu.matmul %3, %4, %cst_5 {dimension_numbers = #tpu.dot_dimension_numbers<[1], [0], [0], [1], [0, 0, 1, 1], [], []>} : vector<128x256xbf16>, vector<256x32xbf16>, vector<128x32xf32> -> vector<128x32xf32>
    %c0_6 = arith.constant 0 : index
    %c0_7 = arith.constant 0 : index
    %6 = vector.load %arg4[%c0_6, %c0_7] : memref<1x32xf32, #tpu.memory_space<vmem>>, vector<1x32xf32>
    %7 = vector.broadcast %6 : vector<1x32xf32> to vector<128x32xf32>
    %8 = arith.addf %5, %7 : vector<128x32xf32>
    %cst_8 = arith.constant 0.000000e+00 : f32
    %9 = vector.broadcast %cst_8 : f32 to vector<128x32xf32>
    %10 = arith.maximumf %8, %9 : vector<128x32xf32>
    %11 = arith.truncf %10 : vector<128x32xf32> to vector<128x32xbf16>
    %c0_9 = arith.constant 0 : index
    %c0_10 = arith.constant 0 : index
    %12 = vector.load %arg5[%c0_9, %c0_10] : memref<128x32xbf16, #tpu.memory_space<vmem>>, vector<128x32xbf16>
    tpu.vector_store %arg5[%c0_9, %c0_10], %11 {strides = array<i32>} : memref<128x32xbf16, #tpu.memory_space<vmem>>, vector<128x32xbf16>,
    return
  }
  func.func @transform_0(%arg0: i32) -> (i32, i32) {
    %c0_i32 = arith.constant 0 : i32
    %c0_i32_0 = arith.constant 0 : i32
    return %arg0, %c0_i32 : i32, i32
  }
  func.func @transform_1(%arg0: i32) -> (i32, i32) {
    %c0_i32 = arith.constant 0 : i32
    %c0_i32_0 = arith.constant 0 : i32
    %c0_i32_1 = arith.constant 0 : i32
    return %c0_i32, %c0_i32_0 : i32, i32
  }
  func.func @transform_2(%arg0: i32) -> (i32, i32) {
    %c0_i32 = arith.constant 0 : i32
    %c0_i32_0 = arith.constant 0 : i32
    %c0_i32_1 = arith.constant 0 : i32
    return %c0_i32, %c0_i32_0 : i32, i32
  }
  func.func @transform_3(%arg0: i32) -> (i32, i32) {
    %c0_i32 = arith.constant 0 : i32
    %c0_i32_0 = arith.constant 0 : i32
    %c0_i32_1 = arith.constant 0 : i32
    return %c0_i32, %c0_i32_0 : i32, i32
  }
  func.func @transform_4(%arg0: i32) -> (i32, i32) {
    %c0_i32 = arith.constant 0 : i32
    %c0_i32_0 = arith.constant 0 : i32
    return %arg0, %c0_i32 : i32, i32
  }
}

module attributes {stable_mosaic.version = 11 : i64} {
  func.func @gcn_layer2_scores_kernel(%arg0: i32, %arg1: memref<128x256xbf16, #tpu.memory_space<vmem>>, %arg2: memref<256x32xbf16, #tpu.memory_space<vmem>>, %arg3: memref<32x8xf32, #tpu.memory_space<vmem>>, %arg4: memref<1x8xf32, #tpu.memory_space<vmem>>, %arg5: memref<2x32xi32, #tpu.memory_space<vmem>>, %arg6: memref<1x32xf32, #tpu.memory_space<vmem>>, %arg7: memref<256x8xf32, #tpu.memory_space<vmem>>) attributes {dimension_semantics = [#tpu.dimension_semantics<arbitrary>], iteration_bounds = array<i64: 2>, scalar_prefetch = 0 : i64, scratch_operands = 1 : i64, tpu.core_type = #tpu.core_type<tc>, window_params = [{transform_indices = @transform_0, window_bounds = array<i64: 128, 256>}, {pipeline_mode = #tpu.pipeline_mode<synchronous>, transform_indices = @transform_1, window_bounds = array<i64: 256, 32>}, {pipeline_mode = #tpu.pipeline_mode<synchronous>, transform_indices = @transform_2, window_bounds = array<i64: 32, 8>}, {pipeline_mode = #tpu.pipeline_mode<synchronous>, transform_indices = @transform_3, window_bounds = array<i64: 1, 8>}, {pipeline_mode = #tpu.pipeline_mode<synchronous>, transform_indices = @transform_4, window_bounds = array<i64: 2, 32>}, {pipeline_mode = #tpu.pipeline_mode<synchronous>, transform_indices = @transform_5, window_bounds = array<i64: 1, 32>}]} {
    %c0_i32 = arith.constant 0 : i32
    %0 = arith.cmpi eq, %arg0, %c0_i32 : i32
    %1 = arith.extui %0 : i1 to i32
    %c0_i32_0 = arith.constant 0 : i32
    %2 = arith.cmpi ne, %1, %c0_i32_0 : i32
    scf.if %2 {
      %cst_11 = arith.constant 0.000000e+00 : f32
      %18 = vector.broadcast %cst_11 : f32 to vector<1x32xf32>
      %c0_12 = arith.constant 0 : index
      %c0_13 = arith.constant 0 : index
      %19 = vector.load %arg6[%c0_12, %c0_13] : memref<1x32xf32, #tpu.memory_space<vmem>>, vector<1x32xf32>
      tpu.vector_store %arg6[%c0_12, %c0_13], %18 {strides = array<i32>} : memref<1x32xf32, #tpu.memory_space<vmem>>, vector<1x32xf32>,
    } else {
    }
    %c0 = arith.constant 0 : index
    %c0_1 = arith.constant 0 : index
    %3 = vector.load %arg1[%c0, %c0_1] : memref<128x256xbf16, #tpu.memory_space<vmem>>, vector<128x256xbf16>
    %c0_2 = arith.constant 0 : index
    %c0_3 = arith.constant 0 : index
    %4 = vector.load %arg2[%c0_2, %c0_3] : memref<256x32xbf16, #tpu.memory_space<vmem>>, vector<256x32xbf16>
    %cst = arith.constant dense<0.000000e+00> : vector<128x32xf32>
    %5 = tpu.matmul %3, %4, %cst {dimension_numbers = #tpu.dot_dimension_numbers<[1], [0], [0], [1], [0, 0, 1, 1], [], []>} : vector<128x256xbf16>, vector<256x32xbf16>, vector<128x32xf32> -> vector<128x32xf32>
    %c0_4 = arith.constant 0 : index
    %c0_5 = arith.constant 0 : index
    %6 = vector.load %arg3[%c0_4, %c0_5] : memref<32x8xf32, #tpu.memory_space<vmem>>, vector<32x8xf32>
    %cst_6 = arith.constant dense<0.000000e+00> : vector<128x8xf32>
    %7 = tpu.matmul %5, %6, %cst_6 {dimension_numbers = #tpu.dot_dimension_numbers<[1], [0], [0], [1], [0, 0, 1, 1], [], []>} : vector<128x32xf32>, vector<32x8xf32>, vector<128x8xf32> -> vector<128x8xf32>
    %c0_7 = arith.constant 0 : index
    %c0_8 = arith.constant 0 : index
    %8 = vector.load %arg4[%c0_7, %c0_8] : memref<1x8xf32, #tpu.memory_space<vmem>>, vector<1x8xf32>
    %9 = vector.broadcast %8 : vector<1x8xf32> to vector<128x8xf32>
    %10 = arith.addf %7, %9 : vector<128x8xf32>
    %c128_i32 = arith.constant 128 : i32
    %11 = arith.muli %arg0, %c128_i32 : i32
    %12 = tpu.assume_multiple %11, 128 : i32
    %13 = arith.index_cast %12 : i32 to index
    %c0_9 = arith.constant 0 : index
    %14 = vector.load %arg7[%13, %c0_9] : memref<256x8xf32, #tpu.memory_space<vmem>>, vector<128x8xf32>
    tpu.vector_store %arg7[%13, %c0_9], %10 {strides = array<i32>} : memref<256x8xf32, #tpu.memory_space<vmem>>, vector<128x8xf32>,
    %c1_i32 = arith.constant 1 : i32
    %15 = arith.cmpi eq, %arg0, %c1_i32 : i32
    %16 = arith.extui %15 : i1 to i32
    %c0_i32_10 = arith.constant 0 : i32
    %17 = arith.cmpi ne, %16, %c0_i32_10 : i32
    scf.if %17 {
      %c0_11 = arith.constant 0 : index
      %c0_12 = arith.constant 0 : index
      %18 = vector.load %arg7[%c0_11, %c0_12] : memref<256x8xf32, #tpu.memory_space<vmem>>, vector<256x8xf32>
      %c0_13 = arith.constant 0 : index
      %c0_14 = arith.constant 0 : index
      %19 = vector.load %arg5[%c0_13, %c0_14] : memref<2x32xi32, #tpu.memory_space<vmem>>, vector<2x32xi32>
      %20 = tpu.iota {dimensions = array<i32: 0>} : vector<256x32xi32>
      %21 = vector.extract_strided_slice %19 {offsets = [0, 0], sizes = [1, 32], strides = [1, 1]} : vector<2x32xi32> to vector<1x32xi32>
      %22 = vector.broadcast %21 : vector<1x32xi32> to vector<256x32xi32>
      %23 = arith.cmpi eq, %20, %22 : vector<256x32xi32>
      %24 = arith.extui %23 : vector<256x32xi1> to vector<256x32xi32>
      %25 = arith.sitofp %24 : vector<256x32xi32> to vector<256x32xf32>
      %26 = vector.extract_strided_slice %19 {offsets = [1, 0], sizes = [1, 32], strides = [1, 1]} : vector<2x32xi32> to vector<1x32xi32>
      %27 = vector.broadcast %26 : vector<1x32xi32> to vector<256x32xi32>
      %28 = arith.cmpi eq, %20, %27 : vector<256x32xi32>
      %29 = arith.extui %28 : vector<256x32xi1> to vector<256x32xi32>
      %30 = arith.sitofp %29 : vector<256x32xi32> to vector<256x32xf32>
      %cst_15 = arith.constant dense<0.000000e+00> : vector<8x32xf32>
      %31 = tpu.matmul %18, %25, %cst_15 {dimension_numbers = #tpu.dot_dimension_numbers<[0], [0], [1], [1], [0, 1, 1, 1], [], []>} : vector<256x8xf32>, vector<256x32xf32>, vector<8x32xf32> -> vector<8x32xf32>
      %cst_16 = arith.constant dense<0.000000e+00> : vector<8x32xf32>
      %32 = tpu.matmul %18, %30, %cst_16 {dimension_numbers = #tpu.dot_dimension_numbers<[0], [0], [1], [1], [0, 1, 1, 1], [], []>} : vector<256x8xf32>, vector<256x32xf32>, vector<8x32xf32> -> vector<8x32xf32>
      %33 = arith.mulf %32, %31 : vector<8x32xf32>
      %cst_17 = arith.constant dense<0.000000e+00> : vector<32xf32>
      %34 = vector.multi_reduction <add>, %33, %cst_17 [0] : vector<8x32xf32> to vector<32xf32>
      %35 = vector.shape_cast %34 : vector<32xf32> to vector<1x32xf32>
      %c0_18 = arith.constant 0 : index
      %c0_19 = arith.constant 0 : index
      %36 = vector.load %arg6[%c0_18, %c0_19] : memref<1x32xf32, #tpu.memory_space<vmem>>, vector<1x32xf32>
      tpu.vector_store %arg6[%c0_18, %c0_19], %35 {strides = array<i32>} : memref<1x32xf32, #tpu.memory_space<vmem>>, vector<1x32xf32>,
    } else {
    }
    return
  }
  func.func @transform_0(%arg0: i32) -> (i32, i32) {
    %c0_i32 = arith.constant 0 : i32
    %c0_i32_0 = arith.constant 0 : i32
    return %arg0, %c0_i32 : i32, i32
  }
  func.func @transform_1(%arg0: i32) -> (i32, i32) {
    %c0_i32 = arith.constant 0 : i32
    %c0_i32_0 = arith.constant 0 : i32
    %c0_i32_1 = arith.constant 0 : i32
    return %c0_i32, %c0_i32_0 : i32, i32
  }
  func.func @transform_2(%arg0: i32) -> (i32, i32) {
    %c0_i32 = arith.constant 0 : i32
    %c0_i32_0 = arith.constant 0 : i32
    %c0_i32_1 = arith.constant 0 : i32
    return %c0_i32, %c0_i32_0 : i32, i32
  }
  func.func @transform_3(%arg0: i32) -> (i32, i32) {
    %c0_i32 = arith.constant 0 : i32
    %c0_i32_0 = arith.constant 0 : i32
    %c0_i32_1 = arith.constant 0 : i32
    return %c0_i32, %c0_i32_0 : i32, i32
  }
  func.func @transform_4(%arg0: i32) -> (i32, i32) {
    %c0_i32 = arith.constant 0 : i32
    %c0_i32_0 = arith.constant 0 : i32
    %c0_i32_1 = arith.constant 0 : i32
    return %c0_i32, %c0_i32_0 : i32, i32
  }
  func.func @transform_5(%arg0: i32) -> (i32, i32) {
    %c0_i32 = arith.constant 0 : i32
    %c0_i32_0 = arith.constant 0 : i32
    %c0_i32_1 = arith.constant 0 : i32
    return %c0_i32, %c0_i32_0 : i32, i32
  }
}

</mosaic_0001>

<llo_original>
// kernel: net_inner_forward.2
$region0: #{net_inner_forward.2}
  #allocation0 [shape = 'u32[]', space=smem, size = 0x4, offset = 0x4, fixed_abs, tag = 'smem constant byte address 0x4 - core index']
  #allocation1 [shape = 'u32[144,128]{1,0:T(1,128)}', space=vmem, size = 0x12000, scoped, tag = 'internal scratch']
  %s0 = inlined_call_operand.hbm [shape: bf16[256,256], index: 0, kind: input, shape index: {}]
  %s1 = inlined_call_operand.vmem [shape: bf16[256,16], index: 1, kind: input, shape index: {}]
  %s2 = inlined_call_operand.vmem [shape: bf16[16,32], index: 2, kind: input, shape index: {}]
  %s3 = inlined_call_operand.vmem [shape: f32[1,32], index: 3, kind: input, shape index: {}]
  %s4 = inlined_call_operand.vmem [shape: bf16[256,32], index: 4, kind: output, shape index: {}]
  %s5 = sld [smem:[#allocation0]]
  $region53: #{net_inner_forward.2} parent=0
    _
  %s7 = ssub.s32 1, %s5
  %s8 = scalar_select 0, %s7, %s5
  $region1: #{net_inner_forward.2} parent=0
    #allocation2 [shape = 'u8[131072]{0}', space=vmem, size = 0x20000, scoped, tag = 'input window, operand 0']
    #allocation3 [shape = 's32[2]{0}', space=sflag, size = 0x8, scoped, tag = 'scoped memory for net_inner_forward.2']
    %9 = vsyncpa [#allocation3], 0
    %s10 = scalar_lea.sflag [#allocation3], 1
    %11 = vsyncpa %s10, 0
    loop: start=0, step=1, limit=4
    $region2: #{net_inner_forward.2} parent=1 // loop_pre_header
      _
    $region3: #{net_inner_forward.2} parent=1 // loop_header
      %s13 = sphi 0, %s17
      %p14 = scmp.ge.s32.totalorder %s13, 4
      %s23 = sphi 0, %s25
      %s26 = sphi 0, %s23
      %s27 = sphi 0, %s26
      %s43 = sphi 0, %s27
      %s47 = sphi 0, %s47
      %s49 = sphi 0, %s47
      %s50 = sphi 0, %s49
      %s64 = sphi 0, %s50
      %s68 = sphi 0, %s68
      %s70 = sphi 0, %s68
      %s71 = sphi 0, %s70
      %s85 = sphi 0, %s71
      %s89 = sphi 0, %s89
      %s91 = sphi 0, %s89
      %s92 = sphi 0, %s91
      %s106 = sphi 0, %s92
      %s112 = sphi 0, %s114
      %s115 = sphi 0, %s112
      %s116 = sphi 0, %s115
      %s132 = sphi 0, %s116
    $region4: #{net_inner_forward.2} parent=1 // loop_header_branch
      %16 = sbr.rel (%p14) target = $region8
    $region5: #{net_inner_forward.2} parent=1 // loop_body
      %s18 = ssub.s32 %s13, 1
      %s19 = ssub.s32 %s13, 2
      %s20 = sadd.s32 %s13, 1
      %s21 = ssub.s32 %s13, %s20
      %p22 = scmp.eq.s32.totalorder %s21, 0
      %s24 = sadd.s32 %s23, 1
      %s25 = scalar_select %p22, %s23, %s24
      %p28 = pneg %p22
      %p29 = scmp.eq.s32.totalorder %s13, 1
      %p30 = por %p28, %p29
      %p31 = scmp.ne.s32.totalorder %s23, %s26
      %p32 = scmp.eq.s32.totalorder %s13, 0
      %p33 = por %p31, %p32
      %p34 = scmp.ne.s32.totalorder %s23, %s26
      %p35 = scmp.eq.s32.totalorder %s18, 1
      %p36 = por %p34, %p35
      %p37 = scmp.ne.s32.totalorder %s26, %s27
      %p38 = scmp.eq.s32.totalorder %s18, 0
      %p39 = por %p37, %p38
      %p40 = scmp.ne.s32.totalorder %s26, %s27
      %p41 = scmp.eq.s32.totalorder %s19, 1
      %p42 = por %p40, %p41
      %p44 = scmp.ne.s32.totalorder %s27, %s43
      %p45 = scmp.eq.s32.totalorder %s19, 0
      %p46 = por %p44, %p45
      %s48 = sadd.s32 %s47, 1
      %p51 = scmp.eq.s32.totalorder %s13, 1
      %p52 = scmp.ne.s32.totalorder %s47, %s49
      %p53 = scmp.eq.s32.totalorder %s13, 0
      %p54 = por %p52, %p53
      %p55 = scmp.ne.s32.totalorder %s47, %s49
      %p56 = scmp.eq.s32.totalorder %s18, 1
      %p57 = por %p55, %p56
      %p58 = scmp.ne.s32.totalorder %s49, %s50
      %p59 = scmp.eq.s32.totalorder %s18, 0
      %p60 = por %p58, %p59
      %p61 = scmp.ne.s32.totalorder %s49, %s50
      %p62 = scmp.eq.s32.totalorder %s19, 1
      %p63 = por %p61, %p62
      %p65 = scmp.ne.s32.totalorder %s50, %s64
      %p66 = scmp.eq.s32.totalorder %s19, 0
      %p67 = por %p65, %p66
      %s69 = sadd.s32 %s68, 1
      %p72 = scmp.eq.s32.totalorder %s13, 1
      %p73 = scmp.ne.s32.totalorder %s68, %s70
      %p74 = scmp.eq.s32.totalorder %s13, 0
      %p75 = por %p73, %p74
      %p76 = scmp.ne.s32.totalorder %s68, %s70
      %p77 = scmp.eq.s32.totalorder %s18, 1
      %p78 = por %p76, %p77
      %p79 = scmp.ne.s32.totalorder %s70, %s71
      %p80 = scmp.eq.s32.totalorder %s18, 0
      %p81 = por %p79, %p80
      %p82 = scmp.ne.s32.totalorder %s70, %s71
      %p83 = scmp.eq.s32.totalorder %s19, 1
      %p84 = por %p82, %p83
      %p86 = scmp.ne.s32.totalorder %s71, %s85
      %p87 = scmp.eq.s32.totalorder %s19, 0
      %p88 = por %p86, %p87
      %s90 = sadd.s32 %s89, 1
      %p93 = scmp.eq.s32.totalorder %s13, 1
      %p94 = scmp.ne.s32.totalorder %s89, %s91
      %p95 = scmp.eq.s32.totalorder %s13, 0
      %p96 = por %p94, %p95
      %p97 = scmp.ne.s32.totalorder %s89, %s91
      %p98 = scmp.eq.s32.totalorder %s18, 1
      %p99 = por %p97, %p98
      %p100 = scmp.ne.s32.totalorder %s91, %s92
      %p101 = scmp.eq.s32.totalorder %s18, 0
      %p102 = por %p100, %p101
      %p103 = scmp.ne.s32.totalorder %s91, %s92
      %p104 = scmp.eq.s32.totalorder %s19, 1
      %p105 = por %p103, %p104
      %p107 = scmp.ne.s32.totalorder %s92, %s106
      %p108 = scmp.eq.s32.totalorder %s19, 0
      %p109 = por %p107, %p108
      %s110 = ssub.s32 %s13, %s20
      %p111 = scmp.eq.s32.totalorder %s110, 0
      %s113 = sadd.s32 %s112, 1
      %s114 = scalar_select %p111, %s112, %s113
      %p117 = pneg %p111
      %p118 = scmp.eq.s32.totalorder %s13, 1
      %p119 = por %p117, %p118
      %p120 = scmp.ne.s32.totalorder %s112, %s115
      %p121 = scmp.eq.s32.totalorder %s13, 0
      %p122 = por %p120, %p121
      %p123 = scmp.ne.s32.totalorder %s112, %s115
      %p124 = scmp.eq.s32.totalorder %s18, 1
      %p125 = por %p123, %p124
      %p126 = scmp.ne.s32.totalorder %s115, %s116
      %p127 = scmp.eq.s32.totalorder %s18, 0
      %p128 = por %p126, %p127
      %p129 = scmp.ne.s32.totalorder %s115, %s116
      %p130 = scmp.eq.s32.totalorder %s19, 1
      %p131 = por %p129, %p130
      %p133 = scmp.ne.s32.totalorder %s116, %s132
      %p134 = scmp.eq.s32.totalorder %s19, 0
      %p135 = por %p133, %p134
      %p136 = scmp.le.s32.totalorder 1, %s13
      %p137 = scmp.lt.s32.totalorder %s13, 3
      %p138 = pnand %p136, %p137
      %p139 = pneg %p138
      // Predicated region
      $region9: #{net_inner_forward.2} parent=5 // pred_check
        _
      $region10: #{net_inner_forward.2} parent=5 // pred_check_branch
        %141 = sbr.rel (%p138) target = $region12
      $region11: #{net_inner_forward.2} parent=5 // pred_region
        %s142 = ssub.s32 %s13, 1
        // Predicated region
        $region13: #{net_inner_forward.2} parent=11 // pred_check
          %p143 = pneg %p60
        $region14: #{net_inner_forward.2} parent=11 // pred_check_branch
          %145 = sbr.rel (%p143) target = $region16
        $region15: #{net_inner_forward.2} parent=11 // pred_region
          _
        $region16: #{net_inner_forward.2} parent=11 // pred_fallthru
          _
        // Predicated region
        $region17: #{net_inner_forward.2} parent=11 // pred_check
          %p146 = pneg %p81
        $region18: #{net_inner_forward.2} parent=11 // pred_check_branch
          %148 = sbr.rel (%p146) target = $region20
        $region19: #{net_inner_forward.2} parent=11 // pred_region
          _
        $region20: #{net_inner_forward.2} parent=11 // pred_fallthru
          _
        // Predicated region
        $region21: #{net_inner_forward.2} parent=11 // pred_check
          %p149 = pneg %p102
        $region22: #{net_inner_forward.2} parent=11 // pred_check_branch
          %151 = sbr.rel (%p149) target = $region24
        $region23: #{net_inner_forward.2} parent=11 // pred_region
          _
        $region24: #{net_inner_forward.2} parent=11 // pred_fallthru
          _
      $region12: #{net_inner_forward.2} parent=5 // pred_fallthru
        _
      %p152 = scmp.lt.s32.totalorder %s13, 2
      // Predicated region
      $region25: #{net_inner_forward.2} parent=5 // pred_check
        %p153 = pneg %p152
      $region26: #{net_inner_forward.2} parent=5 // pred_check_branch
        %155 = sbr.rel (%p153) target = $region28
      $region27: #{net_inner_forward.2} parent=5 // pred_region
        // Predicated region
        $region29: #{net_inner_forward.2} parent=27 // pred_check
          %p156 = pneg %p33
        $region30: #{net_inner_forward.2} parent=27 // pred_check_branch
          %158 = sbr.rel (%p156) target = $region32
        $region31: #{net_inner_forward.2} parent=27 // pred_region
          %s159 = sand.u32 %s23, 1
          %s160 = scalar_lea.sflag [#allocation3], %s159
          %s161 = sand.u32 %s23, 1
          %s162 = smul.addr %s161, 128
          %s163 = scalar_lea.vmem [#allocation2], %s162
          %s164 = smul.u32 16, %s13
          %s166 = ssub.s32 2048, 2048
          %167 = vsyncadd %s160, %s166
          %s168 = smul.addr %s164, 2
          %s169 = smul.addr %s168, 64
          %s170 = scalar_lea.hbm %s0, %s169
          %s171 = sshll.u32 %s163, 4
          %s172 = int_to_ptr.vmem [resolvable:$true] %s171
          %177 = dma.hbm_to_vmem [thread:$0]  %s170, 2048, %s172, %s160, 128, 128, 8
        $region32: #{net_inner_forward.2} parent=27 // pred_fallthru
          _
      $region28: #{net_inner_forward.2} parent=5 // pred_fallthru
        _
      %p178 = scmp.le.s32.totalorder 1, %s13
      %p179 = scmp.lt.s32.totalorder %s13, 3
      %p180 = pnand %p178, %p179
      %p181 = pneg %p180
      // Predicated region
      $region33: #{net_inner_forward.2} parent=5 // pred_check
        _
      $region34: #{net_inner_forward.2} parent=5 // pred_check_branch
        %183 = sbr.rel (%p180) target = $region36
      $region35: #{net_inner_forward.2} parent=5 // pred_region
        %s184 = ssub.s32 %s13, 1
        %s185 = sand.u32 %s26, 1
        %s186 = scalar_lea.sflag [#allocation3], %s185
        %s187 = sand.u32 %s26, 1
        %s188 = smul.addr %s187, 128
        %s189 = scalar_lea.vmem [#allocation2], %s188
        // Predicated region
        $region37: #{net_inner_forward.2} parent=35 // pred_check
          %p190 = pneg %p39
        $region38: #{net_inner_forward.2} parent=35 // pred_check_branch
          %192 = sbr.rel (%p190) target = $region40
        $region39: #{net_inner_forward.2} parent=35 // pred_region
          %193 = dma.done %s186, 2048
        $region40: #{net_inner_forward.2} parent=35 // pred_fallthru
          _
        %s194 = sand.u32 %s26, 1
        %s195 = scalar_lea.sflag [#allocation3], %s194
        %s196 = sand.u32 %s26, 1
        %s197 = smul.addr %s196, 128
        %s198 = scalar_lea.vmem [#allocation2], %s197
        %p199 = pneg %p39
        %p200 = pneg %p36
        %p201 = pneg %p60
        %p202 = pneg %p57
        %p203 = pneg %p81
        %p204 = pneg %p78
        %p205 = pneg %p102
        %p206 = pneg %p99
        %p207 = pneg %p128
        %p208 = pneg %p125
        %s209 = smul.u32 16, %s18
        %p210 = scmp.lt.s32.totalorder %s209, 31
        %s211 = scalar_select %p210, %s209, 31
        %s212 = smul.addr %s211, 4
        %s213 = scalar_lea.vmem %s4, %s212
        %s214 = smul.u32 16, %s18
        %s215 = smul.u32 16, %s18
        %p216 = scmp.lt.s32.totalorder %s215, 31
        %s217 = scalar_select %p216, %s215, 31
        %s218 = smul.addr %s217, 4
        %s219 = scalar_lea.vmem %s4, %s218
        %s220 = smul.u32 16, %s18
        %v222 = vld [vmem:[%s1] sm:$0xf]
        %v223 = vld [vmem:[%s1 + $0x4] sm:$0xf]
        %v224 = vld [vmem:[%s1 + $0x8] sm:$0xf]
        %v225 = vld [vmem:[%s1 + $0xc] sm:$0xf]
        %v226 = vld [vmem:[%s1 + $0x10] sm:$0xf]
        %v227 = vld [vmem:[%s1 + $0x14] sm:$0xf]
        %v228 = vld [vmem:[%s1 + $0x18] sm:$0xf]
        %v229 = vld [vmem:[%s1 + $0x1c] sm:$0xf]
        %v230 = vld [vmem:[%s1 + $0x20] sm:$0xf]
        %v231 = vld [vmem:[%s1 + $0x24] sm:$0xf]
        %v232 = vld [vmem:[%s1 + $0x28] sm:$0xf]
        %v233 = vld [vmem:[%s1 + $0x2c] sm:$0xf]
        %v234 = vld [vmem:[%s1 + $0x30] sm:$0xf]
        %v235 = vld [vmem:[%s1 + $0x34] sm:$0xf]
        %v236 = vld [vmem:[%s1 + $0x38] sm:$0xf]
        %v237 = vld [vmem:[%s1 + $0x3c] sm:$0xf]
        %v238 = vld [vmem:[%s1 + $0x40] sm:$0xf]
        %v239 = vld [vmem:[%s1 + $0x44] sm:$0xf]
        %v240 = vld [vmem:[%s1 + $0x48] sm:$0xf]
        %v241 = vld [vmem:[%s1 + $0x4c] sm:$0xf]
        %v242 = vld [vmem:[%s1 + $0x50] sm:$0xf]
        %v243 = vld [vmem:[%s1 + $0x54] sm:$0xf]
        %v244 = vld [vmem:[%s1 + $0x58] sm:$0xf]
        %v245 = vld [vmem:[%s1 + $0x5c] sm:$0xf]
        %v246 = vld [vmem:[%s1 + $0x60] sm:$0xf]
        %v247 = vld [vmem:[%s1 + $0x64] sm:$0xf]
        %v248 = vld [vmem:[%s1 + $0x68] sm:$0xf]
        %v249 = vld [vmem:[%s1 + $0x6c] sm:$0xf]
        %v250 = vld [vmem:[%s1 + $0x70] sm:$0xf]
        %v251 = vld [vmem:[%s1 + $0x74] sm:$0xf]
        %v252 = vld [vmem:[%s1 + $0x78] sm:$0xf]
        %v253 = vld [vmem:[%s1 + $0x7c] sm:$0xf]
        %v254 = vld [vmem:[%s2] sm:$0xf]
        %v255 = vld [vmem:[%s2 + $0x4] sm:$0xf]
        %v288 = vunpack.c.l.b16 %v222
        %v289 = vunpack.c.l.b16 %v223
        %v290 = vunpack.c.l.b16 %v224
        %v291 = vunpack.c.l.b16 %v225
        %v292 = vunpack.c.l.b16 %v226
        %v293 = vunpack.c.l.b16 %v227
        %v294 = vunpack.c.l.b16 %v228
        %v295 = vunpack.c.l.b16 %v229
        %v296 = vunpack.c.l.b16 %v230
        %v297 = vunpack.c.l.b16 %v231
        %v298 = vunpack.c.l.b16 %v232
        %v299 = vunpack.c.l.b16 %v233
        %v300 = vunpack.c.l.b16 %v234
        %v301 = vunpack.c.l.b16 %v235
        %v302 = vunpack.c.l.b16 %v236
        %v303 = vunpack.c.l.b16 %v237
        %v304 = vunpack.c.l.b16 %v238
        %v305 = vunpack.c.l.b16 %v239
        %v306 = vunpack.c.l.b16 %v240
        %v307 = vunpack.c.l.b16 %v241
        %v308 = vunpack.c.l.b16 %v242
        %v309 = vunpack.c.l.b16 %v243
        %v310 = vunpack.c.l.b16 %v244
        %v311 = vunpack.c.l.b16 %v245
        %v312 = vunpack.c.l.b16 %v246
        %v313 = vunpack.c.l.b16 %v247
        %v314 = vunpack.c.l.b16 %v248
        %v315 = vunpack.c.l.b16 %v249
        %v316 = vunpack.c.l.b16 %v250
        %v317 = vunpack.c.l.b16 %v251
        %v318 = vunpack.c.l.b16 %v252
        %v319 = vunpack.c.l.b16 %v253
        %v320 = vpack.c.b16 %v289, %v288
        %v321 = vpack.c.b16 %v291, %v290
        %v322 = vpack.c.b16 %v293, %v292
        %v323 = vpack.c.b16 %v295, %v294
        %v324 = vpack.c.b16 %v297, %v296
        %v325 = vpack.c.b16 %v299, %v298
        %v326 = vpack.c.b16 %v301, %v300
        %v327 = vpack.c.b16 %v303, %v302
        %v328 = vpack.c.b16 %v305, %v304
        %v329 = vpack.c.b16 %v307, %v306
        %v330 = vpack.c.b16 %v309, %v308
        %v331 = vpack.c.b16 %v311, %v310
        %v332 = vpack.c.b16 %v313, %v312
        %v333 = vpack.c.b16 %v315, %v314
        %v334 = vpack.c.b16 %v317, %v316
        %v335 = vpack.c.b16 %v319, %v318
        %v338 = vunpack.c.l.b16 %v254
        %v339 = vunpack.c.l.b16 %v255
        %v340 = vpack.c.b16 %v339, %v338
        %vm342 = vcmask 130048
        %v344 = vsel %vm342, %v320, 0
        %v347 = vsel %vm342, %v321, 0
        %v350 = vsel %vm342, %v322, 0
        %v353 = vsel %vm342, %v323, 0
        %v356 = vsel %vm342, %v324, 0
        %v359 = vsel %vm342, %v325, 0
        %v362 = vsel %vm342, %v326, 0
        %v365 = vsel %vm342, %v327, 0
        %v368 = vsel %vm342, %v328, 0
        %v371 = vsel %vm342, %v329, 0
        %v374 = vsel %vm342, %v330, 0
        %v377 = vsel %vm342, %v331, 0
        %v380 = vsel %vm342, %v332, 0
        %v383 = vsel %vm342, %v333, 0
        %v386 = vsel %vm342, %v334, 0
        %v389 = vsel %vm342, %v335, 0
        %391 = vmatprep.subr.bf16.mxu0 0
        %392 = vmatpush1.bf16.msra.mxu0 %v340
        %393 = vmatprep.subr.bf16.mxu0 0
        %394 = vmatpush1.bf16.msra.mxu0 0
        %395 = vmatprep.subr.bf16.mxu0 0
        %396 = vmatpush1.bf16.msra.mxu0 0
        %397 = vmatprep.subr.bf16.mxu0 0
        %398 = vmatpush1.bf16.msra.mxu0 0
        %399 = vmatprep.subr.bf16.mxu0 0
        %400 = vmatpush1.bf16.msra.mxu0 0
        %401 = vmatprep.subr.bf16.mxu0 0
        %402 = vmatpush1.bf16.msra.mxu0 0
        %403 = vmatprep.subr.bf16.mxu0 0
        %404 = vmatpush1.bf16.msra.mxu0 0
        %405 = vmatprep.subr.bf16.mxu0 0
        %406 = vmatpush1.bf16.msra.mxu0 0
        %407 = vmatprep.subr.bf16.mxu0 0
        %408 = vmatpush1.bf16.msra.mxu0 0
        %409 = vmatprep.subr.bf16.mxu0 0
        %410 = vmatpush1.bf16.msra.mxu0 0
        %411 = vmatprep.subr.bf16.mxu0 0
        %412 = vmatpush1.bf16.msra.mxu0 0
        %413 = vmatprep.subr.bf16.mxu0 0
        %414 = vmatpush1.bf16.msra.mxu0 0
        %415 = vmatprep.subr.bf16.mxu0 0
        %416 = vmatpush1.bf16.msra.mxu0 0
        %417 = vmatprep.subr.bf16.mxu0 0
        %418 = vmatpush1.bf16.msra.mxu0 0
        %419 = vmatprep.subr.bf16.mxu0 0
        %420 = vmatpush1.bf16.msra.mxu0 0
        %421 = vmatprep.subr.bf16.mxu0 0
        %422 = vmatpush1.bf16.msra.mxu0 0
        %423 = vmatprep.mubr.bf16.mxu0 0
        %424 = vmatmul.mubr.bf16.gmra.mrb[0].mxu0 %v344
        %v425 = vpop.f32.mrb[0].mxu0
        %v426 = vadd.f32 0.0, %v425
        %v427 = vpop.f32.mrb[0].mxu0
        %v428 = vpop.f32.mrb[0].mxu0
        %v429 = vadd.f32 0.0, %v428
        %v430 = vpop.f32.mrb[0].mxu0
        %431 = vmatprep.mubr.bf16.mxu0 0
        %432 = vmatmul.mubr.bf16.gmra.mrb[0].mxu0 %v347
        %v433 = vpop.f32.mrb[0].mxu0
        %v434 = vadd.f32 0.0, %v433
        %v435 = vpop.f32.mrb[0].mxu0
        %v436 = vpop.f32.mrb[0].mxu0
        %v437 = vadd.f32 0.0, %v436
        %v438 = vpop.f32.mrb[0].mxu0
        %439 = vmatprep.mubr.bf16.mxu0 0
        %440 = vmatmul.mubr.bf16.gmra.mrb[0].mxu0 %v350
        %v441 = vpop.f32.mrb[0].mxu0
        %v442 = vadd.f32 0.0, %v441
        %v443 = vpop.f32.mrb[0].mxu0
        %v444 = vpop.f32.mrb[0].mxu0
        %v445 = vadd.f32 0.0, %v444
        %v446 = vpop.f32.mrb[0].mxu0
        %447 = vmatprep.mubr.bf16.mxu0 0
        %448 = vmatmul.mubr.bf16.gmra.mrb[0].mxu0 %v353
        %v449 = vpop.f32.mrb[0].mxu0
        %v450 = vadd.f32 0.0, %v449
        %v451 = vpop.f32.mrb[0].mxu0
        %v452 = vpop.f32.mrb[0].mxu0
        %v453 = vadd.f32 0.0, %v452
        %v454 = vpop.f32.mrb[0].mxu0
        %455 = vmatprep.mubr.bf16.mxu0 0
        %456 = vmatmul.mubr.bf16.gmra.mrb[0].mxu0 %v356
        %v457 = vpop.f32.mrb[0].mxu0
        %v458 = vadd.f32 0.0, %v457
        %v459 = vpop.f32.mrb[0].mxu0
        %v460 = vpop.f32.mrb[0].mxu0
        %v461 = vadd.f32 0.0, %v460
        %v462 = vpop.f32.mrb[0].mxu0
        %463 = vmatprep.mubr.bf16.mxu0 0
        %464 = vmatmul.mubr.bf16.gmra.mrb[0].mxu0 %v359
        %v465 = vpop.f32.mrb[0].mxu0
        %v466 = vadd.f32 0.0, %v465
        %v467 = vpop.f32.mrb[0].mxu0
        %v468 = vpop.f32.mrb[0].mxu0
        %v469 = vadd.f32 0.0, %v468
        %v470 = vpop.f32.mrb[0].mxu0
        %471 = vmatprep.mubr.bf16.mxu0 0
        %472 = vmatmul.mubr.bf16.gmra.mrb[0].mxu0 %v362
        %v473 = vpop.f32.mrb[0].mxu0
        %v474 = vadd.f32 0.0, %v473
        %v475 = vpop.f32.mrb[0].mxu0
        %v476 = vpop.f32.mrb[0].mxu0
        %v477 = vadd.f32 0.0, %v476
        %v478 = vpop.f32.mrb[0].mxu0
        %479 = vmatprep.mubr.bf16.mxu0 0
        %480 = vmatmul.mubr.bf16.gmra.mrb[0].mxu0 %v365
        %v481 = vpop.f32.mrb[0].mxu0
        %v482 = vadd.f32 0.0, %v481
        %v483 = vpop.f32.mrb[0].mxu0
        %v484 = vpop.f32.mrb[0].mxu0
        %v485 = vadd.f32 0.0, %v484
        %v486 = vpop.f32.mrb[0].mxu0
        %487 = vmatprep.mubr.bf16.mxu0 0
        %488 = vmatmul.mubr.bf16.gmra.mrb[0].mxu0 %v368
        %v489 = vpop.f32.mrb[0].mxu0
        %v490 = vadd.f32 0.0, %v489
        %v491 = vpop.f32.mrb[0].mxu0
        %v492 = vpop.f32.mrb[0].mxu0
        %v493 = vadd.f32 0.0, %v492
        %v494 = vpop.f32.mrb[0].mxu0
        %495 = vmatprep.mubr.bf16.mxu0 0
        %496 = vmatmul.mubr.bf16.gmra.mrb[0].mxu0 %v371
        %v497 = vpop.f32.mrb[0].mxu0
        %v498 = vadd.f32 0.0, %v497
        %v499 = vpop.f32.mrb[0].mxu0
        %v500 = vpop.f32.mrb[0].mxu0
        %v501 = vadd.f32 0.0, %v500
        %v502 = vpop.f32.mrb[0].mxu0
        %503 = vmatprep.mubr.bf16.mxu0 0
        %504 = vmatmul.mubr.bf16.gmra.mrb[0].mxu0 %v374
        %v505 = vpop.f32.mrb[0].mxu0
        %v506 = vadd.f32 0.0, %v505
        %v507 = vpop.f32.mrb[0].mxu0
        %v508 = vpop.f32.mrb[0].mxu0
        %v509 = vadd.f32 0.0, %v508
        %v510 = vpop.f32.mrb[0].mxu0
        %511 = vmatprep.mubr.bf16.mxu0 0
        %512 = vmatmul.mubr.bf16.gmra.mrb[0].mxu0 %v377
        %v513 = vpop.f32.mrb[0].mxu0
        %v514 = vadd.f32 0.0, %v513
        %v515 = vpop.f32.mrb[0].mxu0
        %v516 = vpop.f32.mrb[0].mxu0
        %v517 = vadd.f32 0.0, %v516
        %v518 = vpop.f32.mrb[0].mxu0
        %519 = vmatprep.mubr.bf16.mxu0 0
        %520 = vmatmul.mubr.bf16.gmra.mrb[0].mxu0 %v380
        %v521 = vpop.f32.mrb[0].mxu0
        %v522 = vadd.f32 0.0, %v521
        %v523 = vpop.f32.mrb[0].mxu0
        %v524 = vpop.f32.mrb[0].mxu0
        %v525 = vadd.f32 0.0, %v524
        %v526 = vpop.f32.mrb[0].mxu0
        %527 = vmatprep.mubr.bf16.mxu0 0
        %528 = vmatmul.mubr.bf16.gmra.mrb[0].mxu0 %v383
        %v529 = vpop.f32.mrb[0].mxu0
        %v530 = vadd.f32 0.0, %v529
        %v531 = vpop.f32.mrb[0].mxu0
        %v532 = vpop.f32.mrb[0].mxu0
        %v533 = vadd.f32 0.0, %v532
        %v534 = vpop.f32.mrb[0].mxu0
        %535 = vmatprep.mubr.bf16.mxu0 0
        %536 = vmatmul.mubr.bf16.gmra.mrb[0].mxu0 %v386
        %v537 = vpop.f32.mrb[0].mxu0
        %v538 = vadd.f32 0.0, %v537
        %v539 = vpop.f32.mrb[0].mxu0
        %v540 = vpop.f32.mrb[0].mxu0
        %v541 = vadd.f32 0.0, %v540
        %v542 = vpop.f32.mrb[0].mxu0
        %543 = vmatprep.mubr.bf16.mxu0 0
        %544 = vmatmul.mubr.bf16.gmra.mrb[0].mxu0 %v389
        %v545 = vpop.f32.mrb[0].mxu0
        %v546 = vadd.f32 0.0, %v545
        %v547 = vpop.f32.mrb[0].mxu0
        %v548 = vpop.f32.mrb[0].mxu0
        %v549 = vadd.f32 0.0, %v548
        %v550 = vpop.f32.mrb[0].mxu0
        %551 = vdwg.mxu0
        %v552 = vld [vmem:[%s189] sm:$0xff]
        %v553 = vld [vmem:[%s189 + $0x8] sm:$0xff]
        %v554 = vld [vmem:[%s189 + $0x10] sm:$0xff]
        %v555 = vld [vmem:[%s189 + $0x18] sm:$0xff]
        %v556 = vld [vmem:[%s189 + $0x20] sm:$0xff]
        %v557 = vld [vmem:[%s189 + $0x28] sm:$0xff]
        %v558 = vld [vmem:[%s189 + $0x30] sm:$0xff]
        %v559 = vld [vmem:[%s189 + $0x38] sm:$0xff]
        %v560 = vld [vmem:[%s189 + $0x40] sm:$0xff]
        %v561 = vld [vmem:[%s189 + $0x48] sm:$0xff]
        %v562 = vld [vmem:[%s189 + $0x50] sm:$0xff]
        %v563 = vld [vmem:[%s189 + $0x58] sm:$0xff]
        %v564 = vld [vmem:[%s189 + $0x60] sm:$0xff]
        %v565 = vld [vmem:[%s189 + $0x68] sm:$0xff]
        %v566 = vld [vmem:[%s189 + $0x70] sm:$0xff]
        %v567 = vld [vmem:[%s189 + $0x78] sm:$0xff]
        %v568 = vpack.c.bf16 %v429, %v426
        %v569 = vpack.c.bf16 %v437, %v434
        %v570 = vpack.c.bf16 %v445, %v442
        %v571 = vpack.c.bf16 %v453, %v450
        %v572 = vpack.c.bf16 %v461, %v458
        %v573 = vpack.c.bf16 %v469, %v466
        %v574 = vpack.c.bf16 %v477, %v474
        %v575 = vpack.c.bf16 %v485, %v482
        %v576 = vpack.c.bf16 %v493, %v490
        %v577 = vpack.c.bf16 %v501, %v498
        %v578 = vpack.c.bf16 %v509, %v506
        %v579 = vpack.c.bf16 %v517, %v514
        %v580 = vpack.c.bf16 %v525, %v522
        %v581 = vpack.c.bf16 %v533, %v530
        %v582 = vpack.c.bf16 %v541, %v538
        %v583 = vpack.c.bf16 %v549, %v546
        %v584 = vld [vmem:[%s3] sm:$0x1]
        %v586 = vlaneseq
        %v587 = vshrl.u32 %v586, 7
        %v588 = vsub.s32 0, %v587
        %v589 = vrot.slane %v584, %v588
        %v607 = vunpack.c.l.b16 %v552
        %v608 = vunpack.c.h.b16 %v552
        %v609 = vunpack.c.l.b16 %v553
        %v610 = vunpack.c.h.b16 %v553
        %v611 = vunpack.c.l.b16 %v554
        %v612 = vunpack.c.h.b16 %v554
        %v613 = vunpack.c.l.b16 %v555
        %v614 = vunpack.c.h.b16 %v555
        %v615 = vunpack.c.l.b16 %v556
        %v616 = vunpack.c.h.b16 %v556
        %v617 = vunpack.c.l.b16 %v557
        %v618 = vunpack.c.h.b16 %v557
        %v619 = vunpack.c.l.b16 %v558
        %v620 = vunpack.c.h.b16 %v558
        %v621 = vunpack.c.l.b16 %v559
        %v622 = vunpack.c.h.b16 %v559
        %v623 = vunpack.c.l.b16 %v560
        %v624 = vunpack.c.h.b16 %v560
        %v625 = vunpack.c.l.b16 %v561
        %v626 = vunpack.c.h.b16 %v561
        %v627 = vunpack.c.l.b16 %v562
        %v628 = vunpack.c.h.b16 %v562
        %v629 = vunpack.c.l.b16 %v563
        %v630 = vunpack.c.h.b16 %v563
        %v631 = vunpack.c.l.b16 %v564
        %v632 = vunpack.c.h.b16 %v564
        %v633 = vunpack.c.l.b16 %v565
        %v634 = vunpack.c.h.b16 %v565
        %v635 = vunpack.c.l.b16 %v566
        %v636 = vunpack.c.h.b16 %v566
        %v637 = vunpack.c.l.b16 %v567
        %v638 = vunpack.c.h.b16 %v567
        %v639 = vpack.c.b16 %v609, %v607
        %v640 = vpack.c.b16 %v610, %v608
        %v641 = vpack.c.b16 %v613, %v611
        %v642 = vpack.c.b16 %v614, %v612
        %v643 = vpack.c.b16 %v617, %v615
        %v644 = vpack.c.b16 %v618, %v616
        %v645 = vpack.c.b16 %v621, %v619
        %v646 = vpack.c.b16 %v622, %v620
        %v647 = vpack.c.b16 %v625, %v623
        %v648 = vpack.c.b16 %v626, %v624
        %v649 = vpack.c.b16 %v629, %v627
        %v650 = vpack.c.b16 %v630, %v628
        %v651 = vpack.c.b16 %v633, %v631
        %v652 = vpack.c.b16 %v634, %v632
        %v653 = vpack.c.b16 %v637, %v635
        %v654 = vpack.c.b16 %v638, %v636
        %671 = vmatprep.subr.bf16.mxu0 0
        %672 = vmatpush1.bf16.msra.mxu0 %v568
        %673 = vmatprep.subr.bf16.mxu0 0
        %674 = vmatpush1.bf16.msra.mxu0 %v569
        %675 = vmatprep.subr.bf16.mxu0 0
        %676 = vmatpush1.bf16.msra.mxu0 %v570
        %677 = vmatprep.subr.bf16.mxu0 0
        %678 = vmatpush1.bf16.msra.mxu0 %v571
        %679 = vmatprep.subr.bf16.mxu0 0
        %680 = vmatpush1.bf16.msra.mxu0 %v572
        %681 = vmatprep.subr.bf16.mxu0 0
        %682 = vmatpush1.bf16.msra.mxu0 %v573
        %683 = vmatprep.subr.bf16.mxu0 0
        %684 = vmatpush1.bf16.msra.mxu0 %v574
        %685 = vmatprep.subr.bf16.mxu0 0
        %686 = vmatpush1.bf16.msra.mxu0 %v575
        %687 = vmatprep.subr.bf16.mxu0 0
        %688 = vmatpush1.bf16.msra.mxu0 %v576
        %689 = vmatprep.subr.bf16.mxu0 0
        %690 = vmatpush1.bf16.msra.mxu0 %v577
        %691 = vmatprep.subr.bf16.mxu0 0
        %692 = vmatpush1.bf16.msra.mxu0 %v578
        %693 = vmatprep.subr.bf16.mxu0 0
        %694 = vmatpush1.bf16.msra.mxu0 %v579
        %695 = vmatprep.subr.bf16.mxu0 0
        %696 = vmatpush1.bf16.msra.mxu0 %v580
        %697 = vmatprep.subr.bf16.mxu0 0
        %698 = vmatpush1.bf16.msra.mxu0 %v581
        %699 = vmatprep.subr.bf16.mxu0 0
        %700 = vmatpush1.bf16.msra.mxu0 %v582
        %701 = vmatprep.subr.bf16.mxu0 0
        %702 = vmatpush1.bf16.msra.mxu0 %v583
        %703 = vmatprep.mubr.bf16.mxu0 %v640
        %704 = vmatmul.mubr.bf16.gmra.mrb[0].mxu0 %v639
        %v705 = vpop.f32.mrb[0].mxu0
        %v706 = vadd.f32 %v589, %v705
        %v707 = vpop.f32.mrb[0].mxu0
        %v708 = vpop.f32.mrb[0].mxu0
        %v709 = vadd.f32 %v589, %v708
        %v710 = vpop.f32.mrb[0].mxu0
        %711 = vmatprep.mubr.bf16.mxu0 %v642
        %712 = vmatmul.mubr.bf16.gmra.mrb[0].mxu0 %v641
        %v713 = vpop.f32.mrb[0].mxu0
        %v714 = vadd.f32 %v589, %v713
        %v715 = vpop.f32.mrb[0].mxu0
        %v716 = vpop.f32.mrb[0].mxu0
        %v717 = vadd.f32 %v589, %v716
        %v718 = vpop.f32.mrb[0].mxu0
        %719 = vmatprep.mubr.bf16.mxu0 %v644
        %720 = vmatmul.mubr.bf16.gmra.mrb[0].mxu0 %v643
        %v721 = vpop.f32.mrb[0].mxu0
        %v722 = vadd.f32 %v589, %v721
        %v723 = vpop.f32.mrb[0].mxu0
        %v724 = vpop.f32.mrb[0].mxu0
        %v725 = vadd.f32 %v589, %v724
        %v726 = vpop.f32.mrb[0].mxu0
        %727 = vmatprep.mubr.bf16.mxu0 %v646
        %728 = vmatmul.mubr.bf16.gmra.mrb[0].mxu0 %v645
        %v729 = vpop.f32.mrb[0].mxu0
        %v730 = vadd.f32 %v589, %v729
        %v731 = vpop.f32.mrb[0].mxu0
        %v732 = vpop.f32.mrb[0].mxu0
        %v733 = vadd.f32 %v589, %v732
        %v734 = vpop.f32.mrb[0].mxu0
        %735 = vmatprep.mubr.bf16.mxu0 %v648
        %736 = vmatmul.mubr.bf16.gmra.mrb[0].mxu0 %v647
        %v737 = vpop.f32.mrb[0].mxu0
        %v738 = vadd.f32 %v589, %v737
        %v739 = vpop.f32.mrb[0].mxu0
        %v740 = vpop.f32.mrb[0].mxu0
        %v741 = vadd.f32 %v589, %v740
        %v742 = vpop.f32.mrb[0].mxu0
        %743 = vmatprep.mubr.bf16.mxu0 %v650
        %744 = vmatmul.mubr.bf16.gmra.mrb[0].mxu0 %v649
        %v745 = vpop.f32.mrb[0].mxu0
        %v746 = vadd.f32 %v589, %v745
        %v747 = vpop.f32.mrb[0].mxu0
        %v748 = vpop.f32.mrb[0].mxu0
        %v749 = vadd.f32 %v589, %v748
        %v750 = vpop.f32.mrb[0].mxu0
        %751 = vmatprep.mubr.bf16.mxu0 %v652
        %752 = vmatmul.mubr.bf16.gmra.mrb[0].mxu0 %v651
        %v753 = vpop.f32.mrb[0].mxu0
        %v754 = vadd.f32 %v589, %v753
        %v755 = vpop.f32.mrb[0].mxu0
        %v756 = vpop.f32.mrb[0].mxu0
        %v757 = vadd.f32 %v589, %v756
        %v758 = vpop.f32.mrb[0].mxu0
        %759 = vmatprep.mubr.bf16.mxu0 %v654
        %760 = vmatmul.mubr.bf16.gmra.mrb[0].mxu0 %v653
        %v761 = vpop.f32.mrb[0].mxu0
        %v762 = vadd.f32 %v589, %v761
        %v763 = vpop.f32.mrb[0].mxu0
        %v764 = vpop.f32.mrb[0].mxu0
        %v765 = vadd.f32 %v589, %v764
        %v766 = vpop.f32.mrb[0].mxu0
        %767 = vdwg.mxu0
        %v768 = vmax.f32 %v706, 0.0
        %v769 = vmax.f32 %v709, 0.0
        %v770 = vmax.f32 %v714, 0.0
        %v771 = vmax.f32 %v717, 0.0
        %v772 = vmax.f32 %v722, 0.0
        %v773 = vmax.f32 %v725, 0.0
        %v774 = vmax.f32 %v730, 0.0
        %v775 = vmax.f32 %v733, 0.0
        %v776 = vmax.f32 %v738, 0.0
        %v777 = vmax.f32 %v741, 0.0
        %v778 = vmax.f32 %v746, 0.0
        %v779 = vmax.f32 %v749, 0.0
        %v780 = vmax.f32 %v754, 0.0
        %v781 = vmax.f32 %v757, 0.0
        %v782 = vmax.f32 %v762, 0.0
        %v783 = vmax.f32 %v765, 0.0
        %v784 = vpack.c.bf16 %v769, %v768
        %v785 = vpack.c.bf16 %v771, %v770
        %v786 = vpack.c.bf16 %v773, %v772
        %v787 = vpack.c.bf16 %v775, %v774
        %v788 = vpack.c.bf16 %v777, %v776
        %v789 = vpack.c.bf16 %v779, %v778
        %v790 = vpack.c.bf16 %v781, %v780
        %v791 = vpack.c.bf16 %v783, %v782
        %v800 = vunpack.c.l.b16 %v784
        %v801 = vunpack.c.h.b16 %v784
        %v802 = vunpack.c.l.b16 %v785
        %v803 = vunpack.c.h.b16 %v785
        %v804 = vunpack.c.l.b16 %v786
        %v805 = vunpack.c.h.b16 %v786
        %v806 = vunpack.c.l.b16 %v787
        %v807 = vunpack.c.h.b16 %v787
        %v808 = vunpack.c.l.b16 %v788
        %v809 = vunpack.c.h.b16 %v788
        %v810 = vunpack.c.l.b16 %v789
        %v811 = vunpack.c.h.b16 %v789
        %v812 = vunpack.c.l.b16 %v790
        %v813 = vunpack.c.h.b16 %v790
        %v814 = vunpack.c.l.b16 %v791
        %v815 = vunpack.c.h.b16 %v791
        %v816 = vpack.c.b16 %v800, %v800
        %v817 = vpack.c.b16 %v801, %v801
        %v818 = vpack.c.b16 %v802, %v802
        %v819 = vpack.c.b16 %v803, %v803
        %v820 = vpack.c.b16 %v804, %v804
        %v821 = vpack.c.b16 %v805, %v805
        %v822 = vpack.c.b16 %v806, %v806
        %v823 = vpack.c.b16 %v807, %v807
        %v824 = vpack.c.b16 %v808, %v808
        %v825 = vpack.c.b16 %v809, %v809
        %v826 = vpack.c.b16 %v810, %v810
        %v827 = vpack.c.b16 %v811, %v811
        %v828 = vpack.c.b16 %v812, %v812
        %v829 = vpack.c.b16 %v813, %v813
        %v830 = vpack.c.b16 %v814, %v814
        %v831 = vpack.c.b16 %v815, %v815
        %vm848 = vcmask 257024
        %849 = vst.msk [vmem:[%s219] sm:$0xf] %vm848, %v816
        %850 = vst.msk [vmem:[%s219 + $0x4] sm:$0xf] %vm848, %v817
        %851 = vst.msk [vmem:[%s219 + $0x8] sm:$0xf] %vm848, %v818
        %852 = vst.msk [vmem:[%s219 + $0xc] sm:$0xf] %vm848, %v819
        %853 = vst.msk [vmem:[%s219 + $0x10] sm:$0xf] %vm848, %v820
        %854 = vst.msk [vmem:[%s219 + $0x14] sm:$0xf] %vm848, %v821
        %855 = vst.msk [vmem:[%s219 + $0x18] sm:$0xf] %vm848, %v822
        %856 = vst.msk [vmem:[%s219 + $0x1c] sm:$0xf] %vm848, %v823
        %857 = vst.msk [vmem:[%s219 + $0x20] sm:$0xf] %vm848, %v824
        %858 = vst.msk [vmem:[%s219 + $0x24] sm:$0xf] %vm848, %v825
        %859 = vst.msk [vmem:[%s219 + $0x28] sm:$0xf] %vm848, %v826
        %860 = vst.msk [vmem:[%s219 + $0x2c] sm:$0xf] %vm848, %v827
        %861 = vst.msk [vmem:[%s219 + $0x30] sm:$0xf] %vm848, %v828
        %862 = vst.msk [vmem:[%s219 + $0x34] sm:$0xf] %vm848, %v829
        %863 = vst.msk [vmem:[%s219 + $0x38] sm:$0xf] %vm848, %v830
        %864 = vst.msk [vmem:[%s219 + $0x3c] sm:$0xf] %vm848, %v831
        %s865 = smul.u32 16, %s18
        %p866 = scmp.lt.s32.totalorder %s865, 31
        %s867 = scalar_select %p866, %s865, 31
        %s868 = smul.addr %s867, 4
        %s869 = scalar_lea.vmem %s4, %s868
        // Predicated region
        $region41: #{net_inner_forward.2} parent=35 // pred_check
          %p870 = pneg %p125
        $region42: #{net_inner_forward.2} parent=35 // pred_check_branch
          %872 = sbr.rel (%p870) target = $region44
        $region43: #{net_inner_forward.2} parent=35 // pred_region
          %s873 = smul.u32 16, %s18
        $region44: #{net_inner_forward.2} parent=35 // pred_fallthru
          _
      $region36: #{net_inner_forward.2} parent=5 // pred_fallthru
        _
      %p874 = scmp.le.s32.totalorder 2, %s13
      // Predicated region
      $region45: #{net_inner_forward.2} parent=5 // pred_check
        %p875 = pneg %p874
      $region46: #{net_inner_forward.2} parent=5 // pred_check_branch
        %877 = sbr.rel (%p875) target = $region48
      $region47: #{net_inner_forward.2} parent=5 // pred_region
        %s878 = ssub.s32 %s13, 2
        // Predicated region
        $region49: #{net_inner_forward.2} parent=47 // pred_check
          %p879 = pneg %p131
        $region50: #{net_inner_forward.2} parent=47 // pred_check_branch
          %881 = sbr.rel (%p879) target = $region52
        $region51: #{net_inner_forward.2} parent=47 // pred_region
          %s882 = smul.u32 16, %s19
          %p883 = scmp.lt.s32.totalorder %s882, 31
          %s884 = scalar_select %p883, %s882, 31
          %s885 = smul.addr %s884, 4
          %s886 = scalar_lea.vmem %s4, %s885
        $region52: #{net_inner_forward.2} parent=47 // pred_fallthru
          _
      $region48: #{net_inner_forward.2} parent=5 // pred_fallthru
        _
    $region6: #{net_inner_forward.2} parent=1 // loop_footer
      %s17 = sadd.s32 1, %s13
    $region7: #{net_inner_forward.2} parent=1 // loop_footer_branch
      %12 = sbr.rel target = $region3
    $region8: #{net_inner_forward.2} parent=1 // loop_exit
      _
    %887 = vsyncpa [#allocation3], 1
    %s888 = scalar_lea.sflag [#allocation3], 1
    %889 = vsyncpa %s888, 1

// kernel: net_inner_forward.3
$region0: #{net_inner_forward.3}
  #allocation0 [shape = 'u32[]', space=smem, size = 0x4, offset = 0x4, fixed_abs, tag = 'smem constant byte address 0x4 - core index']
  #allocation1 [shape = 'u32[144,128]{1,0:T(1,128)}', space=vmem, size = 0x12000, scoped, tag = 'internal scratch']
  #allocation2 [shape = 'f32[256,8]{1,0:T(8,128)}', space=vmem, size = 0x20000, scoped, tag = 'scratch operand']
  %s0 = inlined_call_operand.vmem [shape: bf16[256,256], index: 0, kind: input, shape index: {}]
  %s1 = inlined_call_operand.vmem [shape: bf16[256,32], index: 1, kind: input, shape index: {}]
  %s2 = inlined_call_operand.vmem [shape: f32[32,8], index: 2, kind: input, shape index: {}]
  %s3 = inlined_call_operand.vmem [shape: f32[1,8], index: 3, kind: input, shape index: {}]
  %s4 = inlined_call_operand.vmem [shape: s32[2,32], index: 4, kind: input, shape index: {}]
  %s5 = inlined_call_operand.hbm [shape: f32[1,32], index: 5, kind: output, shape index: {}]
  %s6 = sld [smem:[#allocation0]]
  $region61: #{net_inner_forward.3} parent=0
    _
  %s8 = ssub.s32 1, %s6
  %s9 = scalar_select 0, %s8, %s6
  $region1: #{net_inner_forward.3} parent=0
    #allocation3 [shape = 'u8[512]{0}', space=vmem, size = 0x400, scoped, tag = 'output window, operand 0, single buffered']
    #allocation4 [shape = 's32[2]{0}', space=sflag, size = 0x8, scoped, tag = 'scoped memory for net_inner_forward.3']
    %10 = vsyncpa [#allocation4], 0
    loop: start=0, step=1, limit=4
    $region2: #{net_inner_forward.3} parent=1 // loop_pre_header
      _
    $region3: #{net_inner_forward.3} parent=1 // loop_header
      %s12 = sphi 0, %s16
      %p13 = scmp.ge.s32.totalorder %s12, 4
      %s22 = sphi 0, %s24
      %s25 = sphi 0, %s22
      %s26 = sphi 0, %s25
      %s42 = sphi 0, %s26
      %s46 = sphi 0, %s46
      %s48 = sphi 0, %s46
      %s49 = sphi 0, %s48
      %s63 = sphi 0, %s49
      %s67 = sphi 0, %s67
      %s69 = sphi 0, %s67
      %s70 = sphi 0, %s69
      %s84 = sphi 0, %s70
      %s88 = sphi 0, %s88
      %s90 = sphi 0, %s88
      %s91 = sphi 0, %s90
      %s105 = sphi 0, %s91
      %s109 = sphi 0, %s109
      %s111 = sphi 0, %s109
      %s112 = sphi 0, %s111
      %s126 = sphi 0, %s112
      %s130 = sphi 0, %s130
      %s132 = sphi 0, %s130
      %s133 = sphi 0, %s132
      %s147 = sphi 0, %s133
    $region4: #{net_inner_forward.3} parent=1 // loop_header_branch
      %15 = sbr.rel (%p13) target = $region8
    $region5: #{net_inner_forward.3} parent=1 // loop_body
      %s17 = ssub.s32 %s12, 1
      %s18 = ssub.s32 %s12, 2
      %s19 = sadd.s32 %s12, 1
      %s20 = ssub.s32 %s12, %s19
      %p21 = scmp.eq.s32.totalorder %s20, 0
      %s23 = sadd.s32 %s22, 1
      %s24 = scalar_select %p21, %s22, %s23
      %p27 = pneg %p21
      %p28 = scmp.eq.s32.totalorder %s12, 1
      %p29 = por %p27, %p28
      %p30 = scmp.ne.s32.totalorder %s22, %s25
      %p31 = scmp.eq.s32.totalorder %s12, 0
      %p32 = por %p30, %p31
      %p33 = scmp.ne.s32.totalorder %s22, %s25
      %p34 = scmp.eq.s32.totalorder %s17, 1
      %p35 = por %p33, %p34
      %p36 = scmp.ne.s32.totalorder %s25, %s26
      %p37 = scmp.eq.s32.totalorder %s17, 0
      %p38 = por %p36, %p37
      %p39 = scmp.ne.s32.totalorder %s25, %s26
      %p40 = scmp.eq.s32.totalorder %s18, 1
      %p41 = por %p39, %p40
      %p43 = scmp.ne.s32.totalorder %s26, %s42
      %p44 = scmp.eq.s32.totalorder %s18, 0
      %p45 = por %p43, %p44
      %s47 = sadd.s32 %s46, 1
      %p50 = scmp.eq.s32.totalorder %s12, 1
      %p51 = scmp.ne.s32.totalorder %s46, %s48
      %p52 = scmp.eq.s32.totalorder %s12, 0
      %p53 = por %p51, %p52
      %p54 = scmp.ne.s32.totalorder %s46, %s48
      %p55 = scmp.eq.s32.totalorder %s17, 1
      %p56 = por %p54, %p55
      %p57 = scmp.ne.s32.totalorder %s48, %s49
      %p58 = scmp.eq.s32.totalorder %s17, 0
      %p59 = por %p57, %p58
      %p60 = scmp.ne.s32.totalorder %s48, %s49
      %p61 = scmp.eq.s32.totalorder %s18, 1
      %p62 = por %p60, %p61
      %p64 = scmp.ne.s32.totalorder %s49, %s63
      %p65 = scmp.eq.s32.totalorder %s18, 0
      %p66 = por %p64, %p65
      %s68 = sadd.s32 %s67, 1
      %p71 = scmp.eq.s32.totalorder %s12, 1
      %p72 = scmp.ne.s32.totalorder %s67, %s69
      %p73 = scmp.eq.s32.totalorder %s12, 0
      %p74 = por %p72, %p73
      %p75 = scmp.ne.s32.totalorder %s67, %s69
      %p76 = scmp.eq.s32.totalorder %s17, 1
      %p77 = por %p75, %p76
      %p78 = scmp.ne.s32.totalorder %s69, %s70
      %p79 = scmp.eq.s32.totalorder %s17, 0
      %p80 = por %p78, %p79
      %p81 = scmp.ne.s32.totalorder %s69, %s70
      %p82 = scmp.eq.s32.totalorder %s18, 1
      %p83 = por %p81, %p82
      %p85 = scmp.ne.s32.totalorder %s70, %s84
      %p86 = scmp.eq.s32.totalorder %s18, 0
      %p87 = por %p85, %p86
      %s89 = sadd.s32 %s88, 1
      %p92 = scmp.eq.s32.totalorder %s12, 1
      %p93 = scmp.ne.s32.totalorder %s88, %s90
      %p94 = scmp.eq.s32.totalorder %s12, 0
      %p95 = por %p93, %p94
      %p96 = scmp.ne.s32.totalorder %s88, %s90
      %p97 = scmp.eq.s32.totalorder %s17, 1
      %p98 = por %p96, %p97
      %p99 = scmp.ne.s32.totalorder %s90, %s91
      %p100 = scmp.eq.s32.totalorder %s17, 0
      %p101 = por %p99, %p100
      %p102 = scmp.ne.s32.totalorder %s90, %s91
      %p103 = scmp.eq.s32.totalorder %s18, 1
      %p104 = por %p102, %p103
      %p106 = scmp.ne.s32.totalorder %s91, %s105
      %p107 = scmp.eq.s32.totalorder %s18, 0
      %p108 = por %p106, %p107
      %s110 = sadd.s32 %s109, 1
      %p113 = scmp.eq.s32.totalorder %s12, 1
      %p114 = scmp.ne.s32.totalorder %s109, %s111
      %p115 = scmp.eq.s32.totalorder %s12, 0
      %p116 = por %p114, %p115
      %p117 = scmp.ne.s32.totalorder %s109, %s111
      %p118 = scmp.eq.s32.totalorder %s17, 1
      %p119 = por %p117, %p118
      %p120 = scmp.ne.s32.totalorder %s111, %s112
      %p121 = scmp.eq.s32.totalorder %s17, 0
      %p122 = por %p120, %p121
      %p123 = scmp.ne.s32.totalorder %s111, %s112
      %p124 = scmp.eq.s32.totalorder %s18, 1
      %p125 = por %p123, %p124
      %p127 = scmp.ne.s32.totalorder %s112, %s126
      %p128 = scmp.eq.s32.totalorder %s18, 0
      %p129 = por %p127, %p128
      %s131 = sadd.s32 %s130, 1
      %p134 = scmp.eq.s32.totalorder %s12, 1
      %p135 = scmp.ne.s32.totalorder %s130, %s132
      %p136 = scmp.eq.s32.totalorder %s12, 0
      %p137 = por %p135, %p136
      %p138 = scmp.ne.s32.totalorder %s130, %s132
      %p139 = scmp.eq.s32.totalorder %s17, 1
      %p140 = por %p138, %p139
      %p141 = scmp.ne.s32.totalorder %s132, %s133
      %p142 = scmp.eq.s32.totalorder %s17, 0
      %p143 = por %p141, %p142
      %p144 = scmp.ne.s32.totalorder %s132, %s133
      %p145 = scmp.eq.s32.totalorder %s18, 1
      %p146 = por %p144, %p145
      %p148 = scmp.ne.s32.totalorder %s133, %s147
      %p149 = scmp.eq.s32.totalorder %s18, 0
      %p150 = por %p148, %p149
      %p151 = scmp.le.s32.totalorder 1, %s12
      %p152 = scmp.lt.s32.totalorder %s12, 3
      %p153 = pnand %p151, %p152
      %p154 = pneg %p153
      // Predicated region
      $region9: #{net_inner_forward.3} parent=5 // pred_check
        _
      $region10: #{net_inner_forward.3} parent=5 // pred_check_branch
        %156 = sbr.rel (%p153) target = $region12
      $region11: #{net_inner_forward.3} parent=5 // pred_region
        %s157 = ssub.s32 %s12, 1
        // Predicated region
        $region13: #{net_inner_forward.3} parent=11 // pred_check
          %p158 = pneg %p59
        $region14: #{net_inner_forward.3} parent=11 // pred_check_branch
          %160 = sbr.rel (%p158) target = $region16
        $region15: #{net_inner_forward.3} parent=11 // pred_region
          _
        $region16: #{net_inner_forward.3} parent=11 // pred_fallthru
          _
        // Predicated region
        $region17: #{net_inner_forward.3} parent=11 // pred_check
          %p161 = pneg %p80
        $region18: #{net_inner_forward.3} parent=11 // pred_check_branch
          %163 = sbr.rel (%p161) target = $region20
        $region19: #{net_inner_forward.3} parent=11 // pred_region
          _
        $region20: #{net_inner_forward.3} parent=11 // pred_fallthru
          _
        // Predicated region
        $region21: #{net_inner_forward.3} parent=11 // pred_check
          %p164 = pneg %p101
        $region22: #{net_inner_forward.3} parent=11 // pred_check_branch
          %166 = sbr.rel (%p164) target = $region24
        $region23: #{net_inner_forward.3} parent=11 // pred_region
          _
        $region24: #{net_inner_forward.3} parent=11 // pred_fallthru
          _
        // Predicated region
        $region25: #{net_inner_forward.3} parent=11 // pred_check
          %p167 = pneg %p122
        $region26: #{net_inner_forward.3} parent=11 // pred_check_branch
          %169 = sbr.rel (%p167) target = $region28
        $region27: #{net_inner_forward.3} parent=11 // pred_region
          _
        $region28: #{net_inner_forward.3} parent=11 // pred_fallthru
          _
      $region12: #{net_inner_forward.3} parent=5 // pred_fallthru
        _
      %p170 = scmp.lt.s32.totalorder %s12, 2
      // Predicated region
      $region29: #{net_inner_forward.3} parent=5 // pred_check
        %p171 = pneg %p170
      $region30: #{net_inner_forward.3} parent=5 // pred_check_branch
        %173 = sbr.rel (%p171) target = $region32
      $region31: #{net_inner_forward.3} parent=5 // pred_region
        // Predicated region
        $region33: #{net_inner_forward.3} parent=31 // pred_check
          %p174 = pneg %p32
        $region34: #{net_inner_forward.3} parent=31 // pred_check_branch
          %176 = sbr.rel (%p174) target = $region36
        $region35: #{net_inner_forward.3} parent=31 // pred_region
          %s177 = smul.u32 16, %s12
          %p178 = scmp.lt.s32.totalorder %s177, 31
          %s179 = scalar_select %p178, %s177, 31
          %s180 = smul.addr %s179, 2
          %s181 = smul.addr %s180, 4
          %s182 = scalar_lea.vmem %s0, %s181
          %s183 = smul.u32 16, %s12
        $region36: #{net_inner_forward.3} parent=31 // pred_fallthru
          _
      $region32: #{net_inner_forward.3} parent=5 // pred_fallthru
        _
      %p184 = scmp.le.s32.totalorder 1, %s12
      %p185 = scmp.lt.s32.totalorder %s12, 3
      %p186 = pnand %p184, %p185
      %p187 = pneg %p186
      // Predicated region
      $region37: #{net_inner_forward.3} parent=5 // pred_check
        _
      $region38: #{net_inner_forward.3} parent=5 // pred_check_branch
        %189 = sbr.rel (%p186) target = $region40
      $region39: #{net_inner_forward.3} parent=5 // pred_region
        %s190 = ssub.s32 %s12, 1
        %s191 = smul.u32 16, %s17
        %p192 = scmp.lt.s32.totalorder %s191, 31
        %s193 = scalar_select %p192, %s191, 31
        %s194 = smul.addr %s193, 2
        %s195 = smul.addr %s194, 4
        %s196 = scalar_lea.vmem %s0, %s195
        %p197 = pneg %p38
        %p198 = pneg %p35
        %p199 = pneg %p59
        %p200 = pneg %p56
        %p201 = pneg %p80
        %p202 = pneg %p77
        %p203 = pneg %p101
        %p204 = pneg %p98
        %p205 = pneg %p122
        %p206 = pneg %p119
        %p207 = pneg %p143
        %p208 = pneg %p140
        %s209 = smul.u32 16, %s17
        %p210 = scmp.lt.s32.totalorder %s209, 31
        %s211 = scalar_select %p210, %s209, 31
        %s212 = smul.addr %s211, 2
        %s213 = smul.addr %s212, 4
        %s214 = scalar_lea.vmem %s0, %s213
        %s215 = smul.u32 16, %s17
        %p217 = scmp.eq.s32.totalorder %s17, 0
        // Predicated region
        $region41: #{net_inner_forward.3} parent=39 // pred_check
          %p218 = pneg %p217
        $region42: #{net_inner_forward.3} parent=39 // pred_check_branch
          %220 = sbr.rel (%p218) target = $region44
        $region43: #{net_inner_forward.3} parent=39 // pred_region
          %vm221 = vcmask 253952
          %222 = vst.msk [vmem:[#allocation3] sm:$0x1] %vm221, 0.0
        $region44: #{net_inner_forward.3} parent=39 // pred_fallthru
          _
        %v223 = vld [vmem:[%s214] sm:$0xff]
        %v224 = vld [vmem:[%s214 + $0x8] sm:$0xff]
        %v225 = vld [vmem:[%s214 + $0x10] sm:$0xff]
        %v226 = vld [vmem:[%s214 + $0x18] sm:$0xff]
        %v227 = vld [vmem:[%s214 + $0x20] sm:$0xff]
        %v228 = vld [vmem:[%s214 + $0x28] sm:$0xff]
        %v229 = vld [vmem:[%s214 + $0x30] sm:$0xff]
        %v230 = vld [vmem:[%s214 + $0x38] sm:$0xff]
        %v231 = vld [vmem:[%s214 + $0x40] sm:$0xff]
        %v232 = vld [vmem:[%s214 + $0x48] sm:$0xff]
        %v233 = vld [vmem:[%s214 + $0x50] sm:$0xff]
        %v234 = vld [vmem:[%s214 + $0x58] sm:$0xff]
        %v235 = vld [vmem:[%s214 + $0x60] sm:$0xff]
        %v236 = vld [vmem:[%s214 + $0x68] sm:$0xff]
        %v237 = vld [vmem:[%s214 + $0x70] sm:$0xff]
        %v238 = vld [vmem:[%s214 + $0x78] sm:$0xff]
        %v239 = vld [vmem:[%s1] sm:$0xf]
        %v240 = vld [vmem:[%s1 + $0x4] sm:$0xf]
        %v241 = vld [vmem:[%s1 + $0x8] sm:$0xf]
        %v242 = vld [vmem:[%s1 + $0xc] sm:$0xf]
        %v243 = vld [vmem:[%s1 + $0x10] sm:$0xf]
        %v244 = vld [vmem:[%s1 + $0x14] sm:$0xf]
        %v245 = vld [vmem:[%s1 + $0x18] sm:$0xf]
        %v246 = vld [vmem:[%s1 + $0x1c] sm:$0xf]
        %v247 = vld [vmem:[%s1 + $0x20] sm:$0xf]
        %v248 = vld [vmem:[%s1 + $0x24] sm:$0xf]
        %v249 = vld [vmem:[%s1 + $0x28] sm:$0xf]
        %v250 = vld [vmem:[%s1 + $0x2c] sm:$0xf]
        %v251 = vld [vmem:[%s1 + $0x30] sm:$0xf]
        %v252 = vld [vmem:[%s1 + $0x34] sm:$0xf]
        %v253 = vld [vmem:[%s1 + $0x38] sm:$0xf]
        %v254 = vld [vmem:[%s1 + $0x3c] sm:$0xf]
        %v255 = vld [vmem:[%s1 + $0x40] sm:$0xf]
        %v256 = vld [vmem:[%s1 + $0x44] sm:$0xf]
        %v257 = vld [vmem:[%s1 + $0x48] sm:$0xf]
        %v258 = vld [vmem:[%s1 + $0x4c] sm:$0xf]
        %v259 = vld [vmem:[%s1 + $0x50] sm:$0xf]
        %v260 = vld [vmem:[%s1 + $0x54] sm:$0xf]
        %v261 = vld [vmem:[%s1 + $0x58] sm:$0xf]
        %v262 = vld [vmem:[%s1 + $0x5c] sm:$0xf]
        %v263 = vld [vmem:[%s1 + $0x60] sm:$0xf]
        %v264 = vld [vmem:[%s1 + $0x64] sm:$0xf]
        %v265 = vld [vmem:[%s1 + $0x68] sm:$0xf]
        %v266 = vld [vmem:[%s1 + $0x6c] sm:$0xf]
        %v267 = vld [vmem:[%s1 + $0x70] sm:$0xf]
        %v268 = vld [vmem:[%s1 + $0x74] sm:$0xf]
        %v269 = vld [vmem:[%s1 + $0x78] sm:$0xf]
        %v270 = vld [vmem:[%s1 + $0x7c] sm:$0xf]
        %v287 = vunpack.c.l.b16 %v223
        %v288 = vunpack.c.h.b16 %v223
        %v289 = vunpack.c.l.b16 %v224
        %v290 = vunpack.c.h.b16 %v224
        %v291 = vunpack.c.l.b16 %v225
        %v292 = vunpack.c.h.b16 %v225
        %v293 = vunpack.c.l.b16 %v226
        %v294 = vunpack.c.h.b16 %v226
        %v295 = vunpack.c.l.b16 %v227
        %v296 = vunpack.c.h.b16 %v227
        %v297 = vunpack.c.l.b16 %v228
        %v298 = vunpack.c.h.b16 %v228
        %v299 = vunpack.c.l.b16 %v229
        %v300 = vunpack.c.h.b16 %v229
        %v301 = vunpack.c.l.b16 %v230
        %v302 = vunpack.c.h.b16 %v230
        %v303 = vunpack.c.l.b16 %v231
        %v304 = vunpack.c.h.b16 %v231
        %v305 = vunpack.c.l.b16 %v232
        %v306 = vunpack.c.h.b16 %v232
        %v307 = vunpack.c.l.b16 %v233
        %v308 = vunpack.c.h.b16 %v233
        %v309 = vunpack.c.l.b16 %v234
        %v310 = vunpack.c.h.b16 %v234
        %v311 = vunpack.c.l.b16 %v235
        %v312 = vunpack.c.h.b16 %v235
        %v313 = vunpack.c.l.b16 %v236
        %v314 = vunpack.c.h.b16 %v236
        %v315 = vunpack.c.l.b16 %v237
        %v316 = vunpack.c.h.b16 %v237
        %v317 = vunpack.c.l.b16 %v238
        %v318 = vunpack.c.h.b16 %v238
        %v319 = vpack.c.b16 %v289, %v287
        %v320 = vpack.c.b16 %v290, %v288
        %v321 = vpack.c.b16 %v293, %v291
        %v322 = vpack.c.b16 %v294, %v292
        %v323 = vpack.c.b16 %v297, %v295
        %v324 = vpack.c.b16 %v298, %v296
        %v325 = vpack.c.b16 %v301, %v299
        %v326 = vpack.c.b16 %v302, %v300
        %v327 = vpack.c.b16 %v305, %v303
        %v328 = vpack.c.b16 %v306, %v304
        %v329 = vpack.c.b16 %v309, %v307
        %v330 = vpack.c.b16 %v310, %v308
        %v331 = vpack.c.b16 %v313, %v311
        %v332 = vpack.c.b16 %v314, %v312
        %v333 = vpack.c.b16 %v317, %v315
        %v334 = vpack.c.b16 %v318, %v316
        %v383 = vunpack.c.l.b16 %v239
        %v384 = vunpack.c.l.b16 %v240
        %v385 = vunpack.c.l.b16 %v241
        %v386 = vunpack.c.l.b16 %v242
        %v387 = vunpack.c.l.b16 %v243
        %v388 = vunpack.c.l.b16 %v244
        %v389 = vunpack.c.l.b16 %v245
        %v390 = vunpack.c.l.b16 %v246
        %v391 = vunpack.c.l.b16 %v247
        %v392 = vunpack.c.l.b16 %v248
        %v393 = vunpack.c.l.b16 %v249
        %v394 = vunpack.c.l.b16 %v250
        %v395 = vunpack.c.l.b16 %v251
        %v396 = vunpack.c.l.b16 %v252
        %v397 = vunpack.c.l.b16 %v253
        %v398 = vunpack.c.l.b16 %v254
        %v399 = vunpack.c.l.b16 %v255
        %v400 = vunpack.c.l.b16 %v256
        %v401 = vunpack.c.l.b16 %v257
        %v402 = vunpack.c.l.b16 %v258
        %v403 = vunpack.c.l.b16 %v259
        %v404 = vunpack.c.l.b16 %v260
        %v405 = vunpack.c.l.b16 %v261
        %v406 = vunpack.c.l.b16 %v262
        %v407 = vunpack.c.l.b16 %v263
        %v408 = vunpack.c.l.b16 %v264
        %v409 = vunpack.c.l.b16 %v265
        %v410 = vunpack.c.l.b16 %v266
        %v411 = vunpack.c.l.b16 %v267
        %v412 = vunpack.c.l.b16 %v268
        %v413 = vunpack.c.l.b16 %v269
        %v414 = vunpack.c.l.b16 %v270
        %v415 = vpack.c.b16 %v384, %v383
        %v416 = vpack.c.b16 %v386, %v385
        %v417 = vpack.c.b16 %v388, %v387
        %v418 = vpack.c.b16 %v390, %v389
        %v419 = vpack.c.b16 %v392, %v391
        %v420 = vpack.c.b16 %v394, %v393
        %v421 = vpack.c.b16 %v396, %v395
        %v422 = vpack.c.b16 %v398, %v397
        %v423 = vpack.c.b16 %v400, %v399
        %v424 = vpack.c.b16 %v402, %v401
        %v425 = vpack.c.b16 %v404, %v403
        %v426 = vpack.c.b16 %v406, %v405
        %v427 = vpack.c.b16 %v408, %v407
        %v428 = vpack.c.b16 %v410, %v409
        %v429 = vpack.c.b16 %v412, %v411
        %v430 = vpack.c.b16 %v414, %v413
        %447 = vmatprep.subr.bf16.mxu0 0
        %448 = vmatpush1.bf16.msra.mxu0 %v415
        %449 = vmatprep.subr.bf16.mxu0 0
        %450 = vmatpush1.bf16.msra.mxu0 %v416
        %451 = vmatprep.subr.bf16.mxu0 0
        %452 = vmatpush1.bf16.msra.mxu0 %v417
        %453 = vmatprep.subr.bf16.mxu0 0
        %454 = vmatpush1.bf16.msra.mxu0 %v418
        %455 = vmatprep.subr.bf16.mxu0 0
        %456 = vmatpush1.bf16.msra.mxu0 %v419
        %457 = vmatprep.subr.bf16.mxu0 0
        %458 = vmatpush1.bf16.msra.mxu0 %v420
        %459 = vmatprep.subr.bf16.mxu0 0
        %460 = vmatpush1.bf16.msra.mxu0 %v421
        %461 = vmatprep.subr.bf16.mxu0 0
        %462 = vmatpush1.bf16.msra.mxu0 %v422
        %463 = vmatprep.subr.bf16.mxu0 0
        %464 = vmatpush1.bf16.msra.mxu0 %v423
        %465 = vmatprep.subr.bf16.mxu0 0
        %466 = vmatpush1.bf16.msra.mxu0 %v424
        %467 = vmatprep.subr.bf16.mxu0 0
        %468 = vmatpush1.bf16.msra.mxu0 %v425
        %469 = vmatprep.subr.bf16.mxu0 0
        %470 = vmatpush1.bf16.msra.mxu0 %v426
        %471 = vmatprep.subr.bf16.mxu0 0
        %472 = vmatpush1.bf16.msra.mxu0 %v427
        %473 = vmatprep.subr.bf16.mxu0 0
        %474 = vmatpush1.bf16.msra.mxu0 %v428
        %475 = vmatprep.subr.bf16.mxu0 0
        %476 = vmatpush1.bf16.msra.mxu0 %v429
        %477 = vmatprep.subr.bf16.mxu0 0
        %478 = vmatpush1.bf16.msra.mxu0 %v430
        %479 = vmatprep.mubr.bf16.mxu0 %v320
        %480 = vmatmul.mubr.bf16.gmra.mrb[0].mxu0 %v319
        %v481 = vpop.f32.mrb[0].mxu0
        %v482 = vadd.f32 0.0, %v481
        %v483 = vpop.f32.mrb[0].mxu0
        %v484 = vpop.f32.mrb[0].mxu0
        %v485 = vadd.f32 0.0, %v484
        %v486 = vpop.f32.mrb[0].mxu0
        %487 = vmatprep.mubr.bf16.mxu0 %v322
        %488 = vmatmul.mubr.bf16.gmra.mrb[0].mxu0 %v321
        %v489 = vpop.f32.mrb[0].mxu0
        %v490 = vadd.f32 0.0, %v489
        %v491 = vpop.f32.mrb[0].mxu0
        %v492 = vpop.f32.mrb[0].mxu0
        %v493 = vadd.f32 0.0, %v492
        %v494 = vpop.f32.mrb[0].mxu0
        %495 = vmatprep.mubr.bf16.mxu0 %v324
        %496 = vmatmul.mubr.bf16.gmra.mrb[0].mxu0 %v323
        %v497 = vpop.f32.mrb[0].mxu0
        %v498 = vadd.f32 0.0, %v497
        %v499 = vpop.f32.mrb[0].mxu0
        %v500 = vpop.f32.mrb[0].mxu0
        %v501 = vadd.f32 0.0, %v500
        %v502 = vpop.f32.mrb[0].mxu0
        %503 = vmatprep.mubr.bf16.mxu0 %v326
        %504 = vmatmul.mubr.bf16.gmra.mrb[0].mxu0 %v325
        %v505 = vpop.f32.mrb[0].mxu0
        %v506 = vadd.f32 0.0, %v505
        %v507 = vpop.f32.mrb[0].mxu0
        %v508 = vpop.f32.mrb[0].mxu0
        %v509 = vadd.f32 0.0, %v508
        %v510 = vpop.f32.mrb[0].mxu0
        %511 = vmatprep.mubr.bf16.mxu0 %v328
        %512 = vmatmul.mubr.bf16.gmra.mrb[0].mxu0 %v327
        %v513 = vpop.f32.mrb[0].mxu0
        %v514 = vadd.f32 0.0, %v513
        %v515 = vpop.f32.mrb[0].mxu0
        %v516 = vpop.f32.mrb[0].mxu0
        %v517 = vadd.f32 0.0, %v516
        %v518 = vpop.f32.mrb[0].mxu0
        %519 = vmatprep.mubr.bf16.mxu0 %v330
        %520 = vmatmul.mubr.bf16.gmra.mrb[0].mxu0 %v329
        %v521 = vpop.f32.mrb[0].mxu0
        %v522 = vadd.f32 0.0, %v521
        %v523 = vpop.f32.mrb[0].mxu0
        %v524 = vpop.f32.mrb[0].mxu0
        %v525 = vadd.f32 0.0, %v524
        %v526 = vpop.f32.mrb[0].mxu0
        %527 = vmatprep.mubr.bf16.mxu0 %v332
        %528 = vmatmul.mubr.bf16.gmra.mrb[0].mxu0 %v331
        %v529 = vpop.f32.mrb[0].mxu0
        %v530 = vadd.f32 0.0, %v529
        %v531 = vpop.f32.mrb[0].mxu0
        %v532 = vpop.f32.mrb[0].mxu0
        %v533 = vadd.f32 0.0, %v532
        %v534 = vpop.f32.mrb[0].mxu0
        %535 = vmatprep.mubr.bf16.mxu0 %v334
        %536 = vmatmul.mubr.bf16.gmra.mrb[0].mxu0 %v333
        %v537 = vpop.f32.mrb[0].mxu0
        %v538 = vadd.f32 0.0, %v537
        %v539 = vpop.f32.mrb[0].mxu0
        %v540 = vpop.f32.mrb[0].mxu0
        %v541 = vadd.f32 0.0, %v540
        %v542 = vpop.f32.mrb[0].mxu0
        %543 = vdwg.mxu0
        %v544 = vld [vmem:[%s2] sm:$0xff]
        %v545 = vld [vmem:[%s2 + $0x8] sm:$0xff]
        %v546 = vld [vmem:[%s2 + $0x10] sm:$0xff]
        %v547 = vld [vmem:[%s2 + $0x18] sm:$0xff]
        %v548 = vld [vmem:[%s3] sm:$0x1]
        %v550 = vlaneseq
        %v551 = vshrl.u32 %v550, 7
        %v552 = vsub.s32 0, %v551
        %v553 = vrot.slane %v548, %v552
        %vm555 = vcmask 261120
        %v557 = vsel %vm555, %v482, 0
        %v560 = vsel %vm555, %v485, 0
        %v563 = vsel %vm555, %v490, 0
        %v566 = vsel %vm555, %v493, 0
        %v569 = vsel %vm555, %v498, 0
        %v572 = vsel %vm555, %v501, 0
        %v575 = vsel %vm555, %v506, 0
        %v578 = vsel %vm555, %v509, 0
        %v581 = vsel %vm555, %v514, 0
        %v584 = vsel %vm555, %v517, 0
        %v587 = vsel %vm555, %v522, 0
        %v590 = vsel %vm555, %v525, 0
        %v593 = vsel %vm555, %v530, 0
        %v596 = vsel %vm555, %v533, 0
        %v599 = vsel %vm555, %v538, 0
        %v602 = vsel %vm555, %v541, 0
        %604 = vmatprep.subr.mxu0 0.0
        %605 = vmatpush1.msra.mxu0 %v544
        %606 = vmatprep.subr.mxu0 0.0
        %607 = vmatpush1.msra.mxu0 %v545
        %608 = vmatprep.subr.mxu0 0.0
        %609 = vmatpush1.msra.mxu0 %v546
        %610 = vmatprep.subr.mxu0 0.0
        %611 = vmatpush1.msra.mxu0 %v547
        %612 = vmatprep.subr.mxu0 0.0
        %613 = vmatpush1.msra.mxu0 0.0
        %614 = vmatprep.subr.mxu0 0.0
        %615 = vmatpush1.msra.mxu0 0.0
        %616 = vmatprep.subr.mxu0 0.0
        %617 = vmatpush1.msra.mxu0 0.0
        %618 = vmatprep.subr.mxu0 0.0
        %619 = vmatpush1.msra.mxu0 0.0
        %620 = vmatprep.subr.mxu0 0.0
        %621 = vmatpush1.msra.mxu0 0.0
        %622 = vmatprep.subr.mxu0 0.0
        %623 = vmatpush1.msra.mxu0 0.0
        %624 = vmatprep.subr.mxu0 0.0
        %625 = vmatpush1.msra.mxu0 0.0
        %626 = vmatprep.subr.mxu0 0.0
        %627 = vmatpush1.msra.mxu0 0.0
        %628 = vmatprep.subr.mxu0 0.0
        %629 = vmatpush1.msra.mxu0 0.0
        %630 = vmatprep.subr.mxu0 0.0
        %631 = vmatpush1.msra.mxu0 0.0
        %632 = vmatprep.subr.mxu0 0.0
        %633 = vmatpush1.msra.mxu0 0.0
        %634 = vmatprep.subr.mxu0 0.0
        %635 = vmatpush1.msra.mxu0 0.0
        %636 = vmatprep.subr.mxu0 0.0
        %637 = vmatpush1.msra.mxu0 0.0
        %638 = vmatprep.subr.mxu0 0.0
        %639 = vmatpush1.msra.mxu0 0.0
        %640 = vmatprep.subr.mxu0 0.0
        %641 = vmatpush1.msra.mxu0 0.0
        %642 = vmatprep.subr.mxu0 0.0
        %643 = vmatpush1.msra.mxu0 0.0
        %644 = vmatprep.subr.mxu0 0.0
        %645 = vmatpush1.msra.mxu0 0.0
        %646 = vmatprep.subr.mxu0 0.0
        %647 = vmatpush1.msra.mxu0 0.0
        %648 = vmatprep.subr.mxu0 0.0
        %649 = vmatpush1.msra.mxu0 0.0
        %650 = vmatprep.subr.mxu0 0.0
        %651 = vmatpush1.msra.mxu0 0.0
        %652 = vmatprep.subr.mxu0 0.0
        %653 = vmatpush1.msra.mxu0 0.0
        %654 = vmatprep.subr.mxu0 0.0
        %655 = vmatpush1.msra.mxu0 0.0
        %656 = vmatprep.subr.mxu0 0.0
        %657 = vmatpush1.msra.mxu0 0.0
        %658 = vmatprep.subr.mxu0 0.0
        %659 = vmatpush1.msra.mxu0 0.0
        %660 = vmatprep.subr.mxu0 0.0
        %661 = vmatpush1.msra.mxu0 0.0
        %662 = vmatprep.subr.mxu0 0.0
        %663 = vmatpush1.msra.mxu0 0.0
        %664 = vmatprep.subr.mxu0 0.0
        %665 = vmatpush1.msra.mxu0 0.0
        %666 = vmatprep.subr.mxu0 0.0
        %667 = vmatpush1.msra.mxu0 0.0
        %668 = vmatprep.mubr.f32.mxu0 0.0
        %669 = vmatmul.mubr.f32.gmra.mrb[0].mxu0 %v557
        %v670 = vpop.f32.mrb[0].mxu0
        %v671 = vadd.f32 %v553, %v670
        %v672 = vpop.f32.mrb[0].mxu0
        %673 = vmatprep.mubr.f32.mxu0 0.0
        %674 = vmatmul.mubr.f32.gmra.mrb[0].mxu0 %v560
        %v675 = vpop.f32.mrb[0].mxu0
        %v676 = vadd.f32 %v553, %v675
        %v677 = vpop.f32.mrb[0].mxu0
        %678 = vmatprep.mubr.f32.mxu0 0.0
        %679 = vmatmul.mubr.f32.gmra.mrb[0].mxu0 %v563
        %v680 = vpop.f32.mrb[0].mxu0
        %v681 = vadd.f32 %v553, %v680
        %v682 = vpop.f32.mrb[0].mxu0
        %683 = vmatprep.mubr.f32.mxu0 0.0
        %684 = vmatmul.mubr.f32.gmra.mrb[0].mxu0 %v566
        %v685 = vpop.f32.mrb[0].mxu0
        %v686 = vadd.f32 %v553, %v685
        %v687 = vpop.f32.mrb[0].mxu0
        %688 = vmatprep.mubr.f32.mxu0 0.0
        %689 = vmatmul.mubr.f32.gmra.mrb[0].mxu0 %v569
        %v690 = vpop.f32.mrb[0].mxu0
        %v691 = vadd.f32 %v553, %v690
        %v692 = vpop.f32.mrb[0].mxu0
        %693 = vmatprep.mubr.f32.mxu0 0.0
        %694 = vmatmul.mubr.f32.gmra.mrb[0].mxu0 %v572
        %v695 = vpop.f32.mrb[0].mxu0
        %v696 = vadd.f32 %v553, %v695
        %v697 = vpop.f32.mrb[0].mxu0
        %698 = vmatprep.mubr.f32.mxu0 0.0
        %699 = vmatmul.mubr.f32.gmra.mrb[0].mxu0 %v575
        %v700 = vpop.f32.mrb[0].mxu0
        %v701 = vadd.f32 %v553, %v700
        %v702 = vpop.f32.mrb[0].mxu0
        %703 = vmatprep.mubr.f32.mxu0 0.0
        %704 = vmatmul.mubr.f32.gmra.mrb[0].mxu0 %v578
        %v705 = vpop.f32.mrb[0].mxu0
        %v706 = vadd.f32 %v553, %v705
        %v707 = vpop.f32.mrb[0].mxu0
        %708 = vmatprep.mubr.f32.mxu0 0.0
        %709 = vmatmul.mubr.f32.gmra.mrb[0].mxu0 %v581
        %v710 = vpop.f32.mrb[0].mxu0
        %v711 = vadd.f32 %v553, %v710
        %v712 = vpop.f32.mrb[0].mxu0
        %713 = vmatprep.mubr.f32.mxu0 0.0
        %714 = vmatmul.mubr.f32.gmra.mrb[0].mxu0 %v584
        %v715 = vpop.f32.mrb[0].mxu0
        %v716 = vadd.f32 %v553, %v715
        %v717 = vpop.f32.mrb[0].mxu0
        %718 = vmatprep.mubr.f32.mxu0 0.0
        %719 = vmatmul.mubr.f32.gmra.mrb[0].mxu0 %v587
        %v720 = vpop.f32.mrb[0].mxu0
        %v721 = vadd.f32 %v553, %v720
        %v722 = vpop.f32.mrb[0].mxu0
        %723 = vmatprep.mubr.f32.mxu0 0.0
        %724 = vmatmul.mubr.f32.gmra.mrb[0].mxu0 %v590
        %v725 = vpop.f32.mrb[0].mxu0
        %v726 = vadd.f32 %v553, %v725
        %v727 = vpop.f32.mrb[0].mxu0
        %728 = vmatprep.mubr.f32.mxu0 0.0
        %729 = vmatmul.mubr.f32.gmra.mrb[0].mxu0 %v593
        %v730 = vpop.f32.mrb[0].mxu0
        %v731 = vadd.f32 %v553, %v730
        %v732 = vpop.f32.mrb[0].mxu0
        %733 = vmatprep.mubr.f32.mxu0 0.0
        %734 = vmatmul.mubr.f32.gmra.mrb[0].mxu0 %v596
        %v735 = vpop.f32.mrb[0].mxu0
        %v736 = vadd.f32 %v553, %v735
        %v737 = vpop.f32.mrb[0].mxu0
        %738 = vmatprep.mubr.f32.mxu0 0.0
        %739 = vmatmul.mubr.f32.gmra.mrb[0].mxu0 %v599
        %v740 = vpop.f32.mrb[0].mxu0
        %v741 = vadd.f32 %v553, %v740
        %v742 = vpop.f32.mrb[0].mxu0
        %743 = vmatprep.mubr.f32.mxu0 0.0
        %744 = vmatmul.mubr.f32.gmra.mrb[0].mxu0 %v602
        %v745 = vpop.f32.mrb[0].mxu0
        %v746 = vadd.f32 %v553, %v745
        %v747 = vpop.f32.mrb[0].mxu0
        %748 = vdwg.mxu0
        %s749 = smul.u32 %s17, 128
        %s750 = scalar_lea.vmem [#allocation2], %s749
        %vm751 = vcmask 64512
        %752 = vst.msk [vmem:[%s750] sm:$0xff] %vm751, %v671
        %753 = vst.msk [vmem:[%s750 + $0x8] sm:$0xff] %vm751, %v676
        %754 = vst.msk [vmem:[%s750 + $0x10] sm:$0xff] %vm751, %v681
        %755 = vst.msk [vmem:[%s750 + $0x18] sm:$0xff] %vm751, %v686
        %756 = vst.msk [vmem:[%s750 + $0x20] sm:$0xff] %vm751, %v691
        %757 = vst.msk [vmem:[%s750 + $0x28] sm:$0xff] %vm751, %v696
        %758 = vst.msk [vmem:[%s750 + $0x30] sm:$0xff] %vm751, %v701
        %759 = vst.msk [vmem:[%s750 + $0x38] sm:$0xff] %vm751, %v706
        %760 = vst.msk [vmem:[%s750 + $0x40] sm:$0xff] %vm751, %v711
        %761 = vst.msk [vmem:[%s750 + $0x48] sm:$0xff] %vm751, %v716
        %762 = vst.msk [vmem:[%s750 + $0x50] sm:$0xff] %vm751, %v721
        %763 = vst.msk [vmem:[%s750 + $0x58] sm:$0xff] %vm751, %v726
        %764 = vst.msk [vmem:[%s750 + $0x60] sm:$0xff] %vm751, %v731
        %765 = vst.msk [vmem:[%s750 + $0x68] sm:$0xff] %vm751, %v736
        %766 = vst.msk [vmem:[%s750 + $0x70] sm:$0xff] %vm751, %v741
        %767 = vst.msk [vmem:[%s750 + $0x78] sm:$0xff] %vm751, %v746
        %p768 = scmp.eq.s32.totalorder %s17, 1
        // Predicated region
        $region45: #{net_inner_forward.3} parent=39 // pred_check
          %p769 = pneg %p768
        $region46: #{net_inner_forward.3} parent=39 // pred_check_branch
          %771 = sbr.rel (%p769) target = $region48
        $region47: #{net_inner_forward.3} parent=39 // pred_region
          %v772 = vld [vmem:[#allocation2] sm:$0xff]
          %v773 = vld [vmem:[#allocation2 + $0x8] sm:$0xff]
          %v774 = vld [vmem:[#allocation2 + $0x10] sm:$0xff]
          %v775 = vld [vmem:[#allocation2 + $0x18] sm:$0xff]
          %v776 = vld [vmem:[#allocation2 + $0x20] sm:$0xff]
          %v777 = vld [vmem:[#allocation2 + $0x28] sm:$0xff]
          %v778 = vld [vmem:[#allocation2 + $0x30] sm:$0xff]
          %v779 = vld [vmem:[#allocation2 + $0x38] sm:$0xff]
          %v780 = vld [vmem:[#allocation2 + $0x40] sm:$0xff]
          %v781 = vld [vmem:[#allocation2 + $0x48] sm:$0xff]
          %v782 = vld [vmem:[#allocation2 + $0x50] sm:$0xff]
          %v783 = vld [vmem:[#allocation2 + $0x58] sm:$0xff]
          %v784 = vld [vmem:[#allocation2 + $0x60] sm:$0xff]
          %v785 = vld [vmem:[#allocation2 + $0x68] sm:$0xff]
          %v786 = vld [vmem:[#allocation2 + $0x70] sm:$0xff]
          %v787 = vld [vmem:[#allocation2 + $0x78] sm:$0xff]
          %v788 = vld [vmem:[#allocation2 + $0x80] sm:$0xff]
          %v789 = vld [vmem:[#allocation2 + $0x88] sm:$0xff]
          %v790 = vld [vmem:[#allocation2 + $0x90] sm:$0xff]
          %v791 = vld [vmem:[#allocation2 + $0x98] sm:$0xff]
          %v792 = vld [vmem:[#allocation2 + $0xa0] sm:$0xff]
          %v793 = vld [vmem:[#allocation2 + $0xa8] sm:$0xff]
          %v794 = vld [vmem:[#allocation2 + $0xb0] sm:$0xff]
          %v795 = vld [vmem:[#allocation2 + $0xb8] sm:$0xff]
          %v796 = vld [vmem:[#allocation2 + $0xc0] sm:$0xff]
          %v797 = vld [vmem:[#allocation2 + $0xc8] sm:$0xff]
          %v798 = vld [vmem:[#allocation2 + $0xd0] sm:$0xff]
          %v799 = vld [vmem:[#allocation2 + $0xd8] sm:$0xff]
          %v800 = vld [vmem:[#allocation2 + $0xe0] sm:$0xff]
          %v801 = vld [vmem:[#allocation2 + $0xe8] sm:$0xff]
          %v802 = vld [vmem:[#allocation2 + $0xf0] sm:$0xff]
          %v803 = vld [vmem:[#allocation2 + $0xf8] sm:$0xff]
          %v804 = vld [vmem:[%s4] sm:$0x3]
          %v805 = vlaneseq
          %v806 = vshrl.u32 %v805, 7
          %v807 = vadd.s32 %v806, 8
          %v808 = vadd.s32 %v806, 16
          %v809 = vadd.s32 %v806, 24
          %v810 = vadd.s32 %v806, 32
          %v811 = vadd.s32 %v806, 40
          %v812 = vadd.s32 %v806, 48
          %v813 = vadd.s32 %v806, 56
          %v814 = vadd.s32 %v806, 64
          %v815 = vadd.s32 %v806, 72
          %v816 = vadd.s32 %v806, 80
          %v817 = vadd.s32 %v806, 88
          %v818 = vadd.s32 %v806, 96
          %v819 = vadd.s32 %v806, 104
          %v820 = vadd.s32 %v806, 112
          %v821 = vadd.s32 %v806, 120
          %v822 = vadd.s32 %v806, 128
          %v823 = vadd.s32 %v806, 136
          %v824 = vadd.s32 %v806, 144
          %v825 = vadd.s32 %v806, 152
          %v826 = vadd.s32 %v806, 160
          %v827 = vadd.s32 %v806, 168
          %v828 = vadd.s32 %v806, 176
          %v829 = vadd.s32 %v806, 184
          %v830 = vadd.s32 %v806, 192
          %v831 = vadd.s32 %v806, 200
          %v832 = vadd.s32 %v806, 208
          %v833 = vadd.s32 %v806, 216
          %v834 = vadd.s32 %v806, 224
          %v835 = vadd.s32 %v806, 232
          %v836 = vadd.s32 %v806, 240
          %v837 = vadd.s32 %v806, 248
          %v838 = vlaneseq
          %v839 = vshrl.u32 %v838, 7
          %v840 = vsub.s32 0, %v839
          %v841 = vrot.slane %v804, %v840
          %vm842 = vcmp.eq.s32.totalorder %v806, %v841
          %vm843 = vcmp.eq.s32.totalorder %v807, %v841
          %vm844 = vcmp.eq.s32.totalorder %v808, %v841
          %vm845 = vcmp.eq.s32.totalorder %v809, %v841
          %vm846 = vcmp.eq.s32.totalorder %v810, %v841
          %vm847 = vcmp.eq.s32.totalorder %v811, %v841
          %vm848 = vcmp.eq.s32.totalorder %v812, %v841
          %vm849 = vcmp.eq.s32.totalorder %v813, %v841
          %vm850 = vcmp.eq.s32.totalorder %v814, %v841
          %vm851 = vcmp.eq.s32.totalorder %v815, %v841
          %vm852 = vcmp.eq.s32.totalorder %v816, %v841
          %vm853 = vcmp.eq.s32.totalorder %v817, %v841
          %vm854 = vcmp.eq.s32.totalorder %v818, %v841
          %vm855 = vcmp.eq.s32.totalorder %v819, %v841
          %vm856 = vcmp.eq.s32.totalorder %v820, %v841
          %vm857 = vcmp.eq.s32.totalorder %v821, %v841
          %vm858 = vcmp.eq.s32.totalorder %v822, %v841
          %vm859 = vcmp.eq.s32.totalorder %v823, %v841
          %vm860 = vcmp.eq.s32.totalorder %v824, %v841
          %vm861 = vcmp.eq.s32.totalorder %v825, %v841
          %vm862 = vcmp.eq.s32.totalorder %v826, %v841
          %vm863 = vcmp.eq.s32.totalorder %v827, %v841
          %vm864 = vcmp.eq.s32.totalorder %v828, %v841
          %vm865 = vcmp.eq.s32.totalorder %v829, %v841
          %vm866 = vcmp.eq.s32.totalorder %v830, %v841
          %vm867 = vcmp.eq.s32.totalorder %v831, %v841
          %vm868 = vcmp.eq.s32.totalorder %v832, %v841
          %vm869 = vcmp.eq.s32.totalorder %v833, %v841
          %vm870 = vcmp.eq.s32.totalorder %v834, %v841
          %vm871 = vcmp.eq.s32.totalorder %v835, %v841
          %vm872 = vcmp.eq.s32.totalorder %v836, %v841
          %vm873 = vcmp.eq.s32.totalorder %v837, %v841
          %v874 = vsel %vm842, 1, 0
          %v875 = vsel %vm843, 1, 0
          %v876 = vsel %vm844, 1, 0
          %v877 = vsel %vm845, 1, 0
          %v878 = vsel %vm846, 1, 0
          %v879 = vsel %vm847, 1, 0
          %v880 = vsel %vm848, 1, 0
          %v881 = vsel %vm849, 1, 0
          %v882 = vsel %vm850, 1, 0
          %v883 = vsel %vm851, 1, 0
          %v884 = vsel %vm852, 1, 0
          %v885 = vsel %vm853, 1, 0
          %v886 = vsel %vm854, 1, 0
          %v887 = vsel %vm855, 1, 0
          %v888 = vsel %vm856, 1, 0
          %v889 = vsel %vm857, 1, 0
          %v890 = vsel %vm858, 1, 0
          %v891 = vsel %vm859, 1, 0
          %v892 = vsel %vm860, 1, 0
          %v893 = vsel %vm861, 1, 0
          %v894 = vsel %vm862, 1, 0
          %v895 = vsel %vm863, 1, 0
          %v896 = vsel %vm864, 1, 0
          %v897 = vsel %vm865, 1, 0
          %v898 = vsel %vm866, 1, 0
          %v899 = vsel %vm867, 1, 0
          %v900 = vsel %vm868, 1, 0
          %v901 = vsel %vm869, 1, 0
          %v902 = vsel %vm870, 1, 0
          %v903 = vsel %vm871, 1, 0
          %v904 = vsel %vm872, 1, 0
          %v905 = vsel %vm873, 1, 0
          %v906 = vcvt.s32.f32 %v874
          %v907 = vcvt.s32.f32 %v875
          %v908 = vcvt.s32.f32 %v876
          %v909 = vcvt.s32.f32 %v877
          %v910 = vcvt.s32.f32 %v878
          %v911 = vcvt.s32.f32 %v879
          %v912 = vcvt.s32.f32 %v880
          %v913 = vcvt.s32.f32 %v881
          %v914 = vcvt.s32.f32 %v882
          %v915 = vcvt.s32.f32 %v883
          %v916 = vcvt.s32.f32 %v884
          %v917 = vcvt.s32.f32 %v885
          %v918 = vcvt.s32.f32 %v886
          %v919 = vcvt.s32.f32 %v887
          %v920 = vcvt.s32.f32 %v888
          %v921 = vcvt.s32.f32 %v889
          %v922 = vcvt.s32.f32 %v890
          %v923 = vcvt.s32.f32 %v891
          %v924 = vcvt.s32.f32 %v892
          %v925 = vcvt.s32.f32 %v893
          %v926 = vcvt.s32.f32 %v894
          %v927 = vcvt.s32.f32 %v895
          %v928 = vcvt.s32.f32 %v896
          %v929 = vcvt.s32.f32 %v897
          %v930 = vcvt.s32.f32 %v898
          %v931 = vcvt.s32.f32 %v899
          %v932 = vcvt.s32.f32 %v900
          %v933 = vcvt.s32.f32 %v901
          %v934 = vcvt.s32.f32 %v902
          %v935 = vcvt.s32.f32 %v903
          %v936 = vcvt.s32.f32 %v904
          %v937 = vcvt.s32.f32 %v905
          %v938 = vlaneseq
          %v939 = vshrl.u32 %v938, 7
          %v940 = vsub.s32 1, %v939
          %v941 = vrot.slane %v804, %v940
          %vm942 = vcmp.eq.s32.totalorder %v806, %v941
          %vm943 = vcmp.eq.s32.totalorder %v807, %v941
          %vm944 = vcmp.eq.s32.totalorder %v808, %v941
          %vm945 = vcmp.eq.s32.totalorder %v809, %v941
          %vm946 = vcmp.eq.s32.totalorder %v810, %v941
          %vm947 = vcmp.eq.s32.totalorder %v811, %v941
          %vm948 = vcmp.eq.s32.totalorder %v812, %v941
          %vm949 = vcmp.eq.s32.totalorder %v813, %v941
          %vm950 = vcmp.eq.s32.totalorder %v814, %v941
          %vm951 = vcmp.eq.s32.totalorder %v815, %v941
          %vm952 = vcmp.eq.s32.totalorder %v816, %v941
          %vm953 = vcmp.eq.s32.totalorder %v817, %v941
          %vm954 = vcmp.eq.s32.totalorder %v818, %v941
          %vm955 = vcmp.eq.s32.totalorder %v819, %v941
          %vm956 = vcmp.eq.s32.totalorder %v820, %v941
          %vm957 = vcmp.eq.s32.totalorder %v821, %v941
          %vm958 = vcmp.eq.s32.totalorder %v822, %v941
          %vm959 = vcmp.eq.s32.totalorder %v823, %v941
          %vm960 = vcmp.eq.s32.totalorder %v824, %v941
          %vm961 = vcmp.eq.s32.totalorder %v825, %v941
          %vm962 = vcmp.eq.s32.totalorder %v826, %v941
          %vm963 = vcmp.eq.s32.totalorder %v827, %v941
          %vm964 = vcmp.eq.s32.totalorder %v828, %v941
          %vm965 = vcmp.eq.s32.totalorder %v829, %v941
          %vm966 = vcmp.eq.s32.totalorder %v830, %v941
          %vm967 = vcmp.eq.s32.totalorder %v831, %v941
          %vm968 = vcmp.eq.s32.totalorder %v832, %v941
          %vm969 = vcmp.eq.s32.totalorder %v833, %v941
          %vm970 = vcmp.eq.s32.totalorder %v834, %v941
          %vm971 = vcmp.eq.s32.totalorder %v835, %v941
          %vm972 = vcmp.eq.s32.totalorder %v836, %v941
          %vm973 = vcmp.eq.s32.totalorder %v837, %v941
          %v974 = vsel %vm942, 1, 0
          %v975 = vsel %vm943, 1, 0
          %v976 = vsel %vm944, 1, 0
          %v977 = vsel %vm945, 1, 0
          %v978 = vsel %vm946, 1, 0
          %v979 = vsel %vm947, 1, 0
          %v980 = vsel %vm948, 1, 0
          %v981 = vsel %vm949, 1, 0
          %v982 = vsel %vm950, 1, 0
          %v983 = vsel %vm951, 1, 0
          %v984 = vsel %vm952, 1, 0
          %v985 = vsel %vm953, 1, 0
          %v986 = vsel %vm954, 1, 0
          %v987 = vsel %vm955, 1, 0
          %v988 = vsel %vm956, 1, 0
          %v989 = vsel %vm957, 1, 0
          %v990 = vsel %vm958, 1, 0
          %v991 = vsel %vm959, 1, 0
          %v992 = vsel %vm960, 1, 0
          %v993 = vsel %vm961, 1, 0
          %v994 = vsel %vm962, 1, 0
          %v995 = vsel %vm963, 1, 0
          %v996 = vsel %vm964, 1, 0
          %v997 = vsel %vm965, 1, 0
          %v998 = vsel %vm966, 1, 0
          %v999 = vsel %vm967, 1, 0
          %v1000 = vsel %vm968, 1, 0
          %v1001 = vsel %vm969, 1, 0
          %v1002 = vsel %vm970, 1, 0
          %v1003 = vsel %vm971, 1, 0
          %v1004 = vsel %vm972, 1, 0
          %v1005 = vsel %vm973, 1, 0
          %v1006 = vcvt.s32.f32 %v974
          %v1007 = vcvt.s32.f32 %v975
          %v1008 = vcvt.s32.f32 %v976
          %v1009 = vcvt.s32.f32 %v977
          %v1010 = vcvt.s32.f32 %v978
          %v1011 = vcvt.s32.f32 %v979
          %v1012 = vcvt.s32.f32 %v980
          %v1013 = vcvt.s32.f32 %v981
          %v1014 = vcvt.s32.f32 %v982
          %v1015 = vcvt.s32.f32 %v983
          %v1016 = vcvt.s32.f32 %v984
          %v1017 = vcvt.s32.f32 %v985
          %v1018 = vcvt.s32.f32 %v986
          %v1019 = vcvt.s32.f32 %v987
          %v1020 = vcvt.s32.f32 %v988
          %v1021 = vcvt.s32.f32 %v989
          %v1022 = vcvt.s32.f32 %v990
          %v1023 = vcvt.s32.f32 %v991
          %v1024 = vcvt.s32.f32 %v992
          %v1025 = vcvt.s32.f32 %v993
          %v1026 = vcvt.s32.f32 %v994
          %v1027 = vcvt.s32.f32 %v995
          %v1028 = vcvt.s32.f32 %v996
          %v1029 = vcvt.s32.f32 %v997
          %v1030 = vcvt.s32.f32 %v998
          %v1031 = vcvt.s32.f32 %v999
          %v1032 = vcvt.s32.f32 %v1000
          %v1033 = vcvt.s32.f32 %v1001
          %v1034 = vcvt.s32.f32 %v1002
          %v1035 = vcvt.s32.f32 %v1003
          %v1036 = vcvt.s32.f32 %v1004
          %v1037 = vcvt.s32.f32 %v1005
          %1038 = vxpose.xlu0.b32.start [1/16] %v772, 128
          %1039 = vxpose.xlu0.b32.cont [2/16] %v773, 128
          %1040 = vxpose.xlu0.b32.cont [3/16] %v774, 128
          %1041 = vxpose.xlu0.b32.cont [4/16] %v775, 128
          %1042 = vxpose.xlu0.b32.cont [5/16] %v776, 128
          %1043 = vxpose.xlu0.b32.cont [6/16] %v777, 128
          %1044 = vxpose.xlu0.b32.cont [7/16] %v778, 128
          %1045 = vxpose.xlu0.b32.cont [8/16] %v779, 128
          %1046 = vxpose.xlu0.b32.cont [9/16] %v780, 128
          %1047 = vxpose.xlu0.b32.cont [10/16] %v781, 128
          %1048 = vxpose.xlu0.b32.cont [11/16] %v782, 128
          %1049 = vxpose.xlu0.b32.cont [12/16] %v783, 128
          %1050 = vxpose.xlu0.b32.cont [13/16] %v784, 128
          %1051 = vxpose.xlu0.b32.cont [14/16] %v785, 128
          %1052 = vxpose.xlu0.b32.cont [15/16] %v786, 128
          %1053 = vxpose.xlu0.b32.end [16/16] %v787, 128
          %v1054 = vpop.trf.xlu0
          %v1055 = vpop.trf.xlu0
          %v1056 = vpop.trf.xlu0
          %v1057 = vpop.trf.xlu0
          %v1058 = vpop.trf.xlu0
          %v1059 = vpop.trf.xlu0
          %v1060 = vpop.trf.xlu0
          %v1061 = vpop.trf.xlu0
          %v1062 = vpop.trf.xlu0
          %v1063 = vpop.trf.xlu0
          %v1064 = vpop.trf.xlu0
          %v1065 = vpop.trf.xlu0
          %v1066 = vpop.trf.xlu0
          %v1067 = vpop.trf.xlu0
          %v1068 = vpop.trf.xlu0
          %v1069 = vpop.trf.xlu0
          %1070 = vxpose.xlu0.b32.start [1/16] %v788, 128
          %1071 = vxpose.xlu0.b32.cont [2/16] %v789, 128
          %1072 = vxpose.xlu0.b32.cont [3/16] %v790, 128
          %1073 = vxpose.xlu0.b32.cont [4/16] %v791, 128
          %1074 = vxpose.xlu0.b32.cont [5/16] %v792, 128
          %1075 = vxpose.xlu0.b32.cont [6/16] %v793, 128
          %1076 = vxpose.xlu0.b32.cont [7/16] %v794, 128
          %1077 = vxpose.xlu0.b32.cont [8/16] %v795, 128
          %1078 = vxpose.xlu0.b32.cont [9/16] %v796, 128
          %1079 = vxpose.xlu0.b32.cont [10/16] %v797, 128
          %1080 = vxpose.xlu0.b32.cont [11/16] %v798, 128
          %1081 = vxpose.xlu0.b32.cont [12/16] %v799, 128
          %1082 = vxpose.xlu0.b32.cont [13/16] %v800, 128
          %1083 = vxpose.xlu0.b32.cont [14/16] %v801, 128
          %1084 = vxpose.xlu0.b32.cont [15/16] %v802, 128
          %1085 = vxpose.xlu0.b32.end [16/16] %v803, 128
          %v1086 = vpop.trf.xlu0
          %v1087 = vpop.trf.xlu0
          %v1088 = vpop.trf.xlu0
          %v1089 = vpop.trf.xlu0
          %v1090 = vpop.trf.xlu0
          %v1091 = vpop.trf.xlu0
          %v1092 = vpop.trf.xlu0
          %v1093 = vpop.trf.xlu0
          %v1094 = vpop.trf.xlu0
          %v1095 = vpop.trf.xlu0
          %v1096 = vpop.trf.xlu0
          %v1097 = vpop.trf.xlu0
          %v1098 = vpop.trf.xlu0
          %v1099 = vpop.trf.xlu0
          %v1100 = vpop.trf.xlu0
          %v1101 = vpop.trf.xlu0
          %1102 = vmatprep.subr.mxu0 0.0
          %1103 = vmatpush1.msra.mxu0 %v906
          %1104 = vmatprep.subr.mxu0 0.0
          %1105 = vmatpush1.msra.mxu0 %v907
          %1106 = vmatprep.subr.mxu0 0.0
          %1107 = vmatpush1.msra.mxu0 %v908
          %1108 = vmatprep.subr.mxu0 0.0
          %1109 = vmatpush1.msra.mxu0 %v909
          %1110 = vmatprep.subr.mxu0 0.0
          %1111 = vmatpush1.msra.mxu0 %v910
          %1112 = vmatprep.subr.mxu0 0.0
          %1113 = vmatpush1.msra.mxu0 %v911
          %1114 = vmatprep.subr.mxu0 0.0
          %1115 = vmatpush1.msra.mxu0 %v912
          %1116 = vmatprep.subr.mxu0 0.0
          %1117 = vmatpush1.msra.mxu0 %v913
          %1118 = vmatprep.subr.mxu0 0.0
          %1119 = vmatpush1.msra.mxu0 %v914
          %1120 = vmatprep.subr.mxu0 0.0
          %1121 = vmatpush1.msra.mxu0 %v915
          %1122 = vmatprep.subr.mxu0 0.0
          %1123 = vmatpush1.msra.mxu0 %v916
          %1124 = vmatprep.subr.mxu0 0.0
          %1125 = vmatpush1.msra.mxu0 %v917
          %1126 = vmatprep.subr.mxu0 0.0
          %1127 = vmatpush1.msra.mxu0 %v918
          %1128 = vmatprep.subr.mxu0 0.0
          %1129 = vmatpush1.msra.mxu0 %v919
          %1130 = vmatprep.subr.mxu0 0.0
          %1131 = vmatpush1.msra.mxu0 %v920
          %1132 = vmatprep.subr.mxu0 0.0
          %1133 = vmatpush1.msra.mxu0 %v921
          %1134 = vmatprep.subr.mxu0 0.0
          %1135 = vmatpush1.msra.mxu0 %v922
          %1136 = vmatprep.subr.mxu0 0.0
          %1137 = vmatpush1.msra.mxu0 %v923
          %1138 = vmatprep.subr.mxu0 0.0
          %1139 = vmatpush1.msra.mxu0 %v924
          %1140 = vmatprep.subr.mxu0 0.0
          %1141 = vmatpush1.msra.mxu0 %v925
          %1142 = vmatprep.subr.mxu0 0.0
          %1143 = vmatpush1.msra.mxu0 %v926
          %1144 = vmatprep.subr.mxu0 0.0
          %1145 = vmatpush1.msra.mxu0 %v927
          %1146 = vmatprep.subr.mxu0 0.0
          %1147 = vmatpush1.msra.mxu0 %v928
          %1148 = vmatprep.subr.mxu0 0.0
          %1149 = vmatpush1.msra.mxu0 %v929
          %1150 = vmatprep.subr.mxu0 0.0
          %1151 = vmatpush1.msra.mxu0 %v930
          %1152 = vmatprep.subr.mxu0 0.0
          %1153 = vmatpush1.msra.mxu0 %v931
          %1154 = vmatprep.subr.mxu0 0.0
          %1155 = vmatpush1.msra.mxu0 %v932
          %1156 = vmatprep.subr.mxu0 0.0
          %1157 = vmatpush1.msra.mxu0 %v933
          %1158 = vmatprep.subr.mxu0 0.0
          %1159 = vmatpush1.msra.mxu0 %v934
          %1160 = vmatprep.subr.mxu0 0.0
          %1161 = vmatpush1.msra.mxu0 %v935
          %1162 = vmatprep.subr.mxu0 0.0
          %1163 = vmatpush1.msra.mxu0 %v936
          %1164 = vmatprep.subr.mxu0 0.0
          %1165 = vmatpush1.msra.mxu0 %v937
          %1166 = vmatprep.mubr.f32.mxu0 %v1086
          %1167 = vmatmul.mubr.f32.gmra.mrb[0].mxu0 %v1054
          %v1168 = vpop.f32.mrb[0].mxu0
          %v1169 = vadd.f32 0.0, %v1168
          %v1170 = vpop.f32.mrb[0].mxu0
          %1171 = vdwg.mxu0
          %1172 = vmatprep.subr.mxu0 0.0
          %1173 = vmatpush1.msra.mxu0 %v1006
          %1174 = vmatprep.subr.mxu0 0.0
          %1175 = vmatpush1.msra.mxu0 %v1007
          %1176 = vmatprep.subr.mxu0 0.0
          %1177 = vmatpush1.msra.mxu0 %v1008
          %1178 = vmatprep.subr.mxu0 0.0
          %1179 = vmatpush1.msra.mxu0 %v1009
          %1180 = vmatprep.subr.mxu0 0.0
          %1181 = vmatpush1.msra.mxu0 %v1010
          %1182 = vmatprep.subr.mxu0 0.0
          %1183 = vmatpush1.msra.mxu0 %v1011
          %1184 = vmatprep.subr.mxu0 0.0
          %1185 = vmatpush1.msra.mxu0 %v1012
          %1186 = vmatprep.subr.mxu0 0.0
          %1187 = vmatpush1.msra.mxu0 %v1013
          %1188 = vmatprep.subr.mxu0 0.0
          %1189 = vmatpush1.msra.mxu0 %v1014
          %1190 = vmatprep.subr.mxu0 0.0
          %1191 = vmatpush1.msra.mxu0 %v1015
          %1192 = vmatprep.subr.mxu0 0.0
          %1193 = vmatpush1.msra.mxu0 %v1016
          %1194 = vmatprep.subr.mxu0 0.0
          %1195 = vmatpush1.msra.mxu0 %v1017
          %1196 = vmatprep.subr.mxu0 0.0
          %1197 = vmatpush1.msra.mxu0 %v1018
          %1198 = vmatprep.subr.mxu0 0.0
          %1199 = vmatpush1.msra.mxu0 %v1019
          %1200 = vmatprep.subr.mxu0 0.0
          %1201 = vmatpush1.msra.mxu0 %v1020
          %1202 = vmatprep.subr.mxu0 0.0
          %1203 = vmatpush1.msra.mxu0 %v1021
          %1204 = vmatprep.subr.mxu0 0.0
          %1205 = vmatpush1.msra.mxu0 %v1022
          %1206 = vmatprep.subr.mxu0 0.0
          %1207 = vmatpush1.msra.mxu0 %v1023
          %1208 = vmatprep.subr.mxu0 0.0
          %1209 = vmatpush1.msra.mxu0 %v1024
          %1210 = vmatprep.subr.mxu0 0.0
          %1211 = vmatpush1.msra.mxu0 %v1025
          %1212 = vmatprep.subr.mxu0 0.0
          %1213 = vmatpush1.msra.mxu0 %v1026
          %1214 = vmatprep.subr.mxu0 0.0
          %1215 = vmatpush1.msra.mxu0 %v1027
          %1216 = vmatprep.subr.mxu0 0.0
          %1217 = vmatpush1.msra.mxu0 %v1028
          %1218 = vmatprep.subr.mxu0 0.0
          %1219 = vmatpush1.msra.mxu0 %v1029
          %1220 = vmatprep.subr.mxu0 0.0
          %1221 = vmatpush1.msra.mxu0 %v1030
          %1222 = vmatprep.subr.mxu0 0.0
          %1223 = vmatpush1.msra.mxu0 %v1031
          %1224 = vmatprep.subr.mxu0 0.0
          %1225 = vmatpush1.msra.mxu0 %v1032
          %1226 = vmatprep.subr.mxu0 0.0
          %1227 = vmatpush1.msra.mxu0 %v1033
          %1228 = vmatprep.subr.mxu0 0.0
          %1229 = vmatpush1.msra.mxu0 %v1034
          %1230 = vmatprep.subr.mxu0 0.0
          %1231 = vmatpush1.msra.mxu0 %v1035
          %1232 = vmatprep.subr.mxu0 0.0
          %1233 = vmatpush1.msra.mxu0 %v1036
          %1234 = vmatprep.subr.mxu0 0.0
          %1235 = vmatpush1.msra.mxu0 %v1037
          %1236 = vmatprep.mubr.f32.mxu0 %v1086
          %1237 = vmatmul.mubr.f32.gmra.mrb[0].mxu0 %v1054
          %v1238 = vpop.f32.mrb[0].mxu0
          %v1239 = vadd.f32 0.0, %v1238
          %v1240 = vpop.f32.mrb[0].mxu0
          %1241 = vdwg.mxu0
          %v1242 = vmul.f32 %v1239, %v1169
          %v1243 = vsel %vm555, %v1242, 0.0
          %v1244 = vrot.slane %v1243, 4
          %v1245 = vadd.f32 %v1243, %v1244
          %v1246 = vrot.slane %v1245, 2
          %v1247 = vadd.f32 %v1245, %v1246
          %v1248 = vrot.slane %v1247, 1
          %v1249 = vadd.f32 %v1247, %v1248
          %vm1250 = vcmask 253952
          %1251 = vst.msk [vmem:[#allocation3] sm:$0x1] %vm1250, %v1249
        $region48: #{net_inner_forward.3} parent=39 // pred_fallthru
          _
        // Predicated region
        $region49: #{net_inner_forward.3} parent=39 // pred_check
          %p1252 = pneg %p140
        $region50: #{net_inner_forward.3} parent=39 // pred_check_branch
          %1254 = sbr.rel (%p1252) target = $region52
        $region51: #{net_inner_forward.3} parent=39 // pred_region
          %s1256 = ssub.s32 16, 16
          %1257 = vsyncadd [#allocation4], %s1256
          %s1259 = sshll.u32 [#allocation3], 4
          %s1260 = int_to_ptr.vmem [resolvable:$true] %s1259
          %1262 = dma.vmem_to_hbm [thread:$0]  %s1260, 16, %s5, [#allocation4]
        $region52: #{net_inner_forward.3} parent=39 // pred_fallthru
          _
        // Predicated region
        $region53: #{net_inner_forward.3} parent=39 // pred_check
          %p1263 = pneg %p140
        $region54: #{net_inner_forward.3} parent=39 // pred_check_branch
          %1265 = sbr.rel (%p1263) target = $region56
        $region55: #{net_inner_forward.3} parent=39 // pred_region
          %1266 = dma.done [#allocation4], 16
        $region56: #{net_inner_forward.3} parent=39 // pred_fallthru
          _
      $region40: #{net_inner_forward.3} parent=5 // pred_fallthru
        _
      %p1267 = scmp.le.s32.totalorder 2, %s12
      // Predicated region
      $region57: #{net_inner_forward.3} parent=5 // pred_check
        %p1268 = pneg %p1267
      $region58: #{net_inner_forward.3} parent=5 // pred_check_branch
        %1270 = sbr.rel (%p1268) target = $region60
      $region59: #{net_inner_forward.3} parent=5 // pred_region
        %s1271 = ssub.s32 %s12, 2
      $region60: #{net_inner_forward.3} parent=5 // pred_fallthru
        _
    $region6: #{net_inner_forward.3} parent=1 // loop_footer
      %s16 = sadd.s32 1, %s12
    $region7: #{net_inner_forward.3} parent=1 // loop_footer_branch
      %11 = sbr.rel target = $region3
    $region8: #{net_inner_forward.3} parent=1 // loop_exit
      _
    %1272 = vsyncpa [#allocation4], 1
    %s1273 = scalar_lea.sflag [#allocation4], 1
    %1274 = vsyncpa %s1273, 1

</llo_original>
